<compile_context>
chip_gen: v7x
topology: tpu7x:2x2x1
jax: 0.10.0
libtpu: 0.0.40
codegen_flags: <defaults>
</compile_context>

<pallas_src>
import jax
import jax.numpy as jnp
from jax.experimental import pallas as pl
from jax.experimental.pallas import tpu as pltpu

LANES = 128            # batch laid out dense across lanes
MAX_TILE_ROWS = 512    # sublane rows per grid step -> 512*128 samples / step
                       # (in/out tiles + ~18 live feature planes ≈ 6 MiB VMEM,
                       #  well inside the 32 MiB default scoped limit, v7x-safe)

N_IN = 1
N_HID = 9
N_OUT = 1
N_HIDDEN_LAYERS = 2    # matches DampedOscillatorNaive default


def _dense_tanh(h, w_ref, b_ref):
    """Linear(9->9) + Tanh on a list of 9 lane-dense feature planes.

    w_ref is a flat (81,) f32 SMEM ref in x@W layout: w[j, k] -> w_ref[j*9+k].
    """
    out = []
    for k in range(N_HID):
        acc = h[0] * w_ref[0 * N_HID + k]
        for j in range(1, N_HID):
            acc = acc + h[j] * w_ref[j * N_HID + k]
        out.append(jnp.tanh(acc + b_ref[k]))
    return out


def _mlp_kernel(x_ref, w0_ref, b0_ref, w1_ref, b1_ref, w2_ref, b2_ref,
                w3_ref, b3_ref, o_ref):
    # x_ref / o_ref: (tile_rows, 128) f32, batch dense across sublanes + lanes.
    t = x_ref[...]

    # Linear(1 -> 9) + Tanh: 9 feature planes from broadcast SMEM scalars.
    h = [jnp.tanh(w0_ref[j] * t + b0_ref[j]) for j in range(N_HID)]

    # Two hidden Linear(9 -> 9) + Tanh layers (VPU mul/add + EUP tanh).
    h = _dense_tanh(h, w1_ref, b1_ref)
    h = _dense_tanh(h, w2_ref, b2_ref)

    # Linear(9 -> 1): single lane-dense output plane.
    out = h[0] * w3_ref[0]
    for j in range(1, N_HID):
        out = out + h[j] * w3_ref[j]
    o_ref[...] = (out + b3_ref[0]).astype(o_ref.dtype)


def pack_params(params):
    """Flatten the (in, out)-layout weights / biases into 1-D f32 arrays once,
    outside the per-call wrapper (they go straight into SMEM)."""
    (w0, b0), (w1, b1), (w2, b2), (w3, b3) = params
    flat = lambda a: jnp.asarray(a, jnp.float32).reshape(-1)
    return (flat(w0), flat(b0), flat(w1), flat(b1),
            flat(w2), flat(b2), flat(w3), flat(b3))


@jax.jit
def damped_oscillator_forward(t, packed):
    """t: (N, 1) float32 -> (N, 1) float32, same semantics as module.forward."""
    t = jnp.asarray(t, jnp.float32)
    n = t.shape[0]

    # Lay the batch out dense over (sublanes, lanes): row-major (rows, 128).
    rows_needed = max(1, -(-n // LANES))
    tile_rows = min(MAX_TILE_ROWS, ((rows_needed + 7) // 8) * 8)
    rows_pad = -(-rows_needed // tile_rows) * tile_rows

    x = jnp.pad(t.reshape(-1), (0, rows_pad * LANES - n)).reshape(rows_pad, LANES)

    grid = (rows_pad // tile_rows,)
    tile_spec = pl.BlockSpec((tile_rows, LANES), lambda i: (i, 0))
    smem_spec = pl.BlockSpec(memory_space=pltpu.MemorySpace.SMEM)

    out = pl.pallas_call(
        _mlp_kernel,
        out_shape=jax.ShapeDtypeStruct((rows_pad, LANES), jnp.float32),
        grid_spec=pltpu.PrefetchScalarGridSpec(
            num_scalar_prefetch=0,
            grid=grid,
            in_specs=[tile_spec] + [smem_spec] * 8,
            out_specs=tile_spec,
        ),
        compiler_params=pltpu.CompilerParams(
            dimension_semantics=("parallel",)),
    )(x, *packed)

    # Padded tail elements compute well-defined garbage and are sliced off.
    return out.reshape(-1)[:n].reshape(n, 1)


def init_params(key):
    """Deterministic params mirroring nn.Linear default init:
    U(-1/sqrt(fan_in), 1/sqrt(fan_in)) for both weight and bias.
    Weights are stored in x@W layout, i.e. shape (in_dim, out_dim)."""
    dims = [(N_IN, N_HID)] + [(N_HID, N_HID)] * N_HIDDEN_LAYERS + [(N_HID, N_OUT)]
    params = []
    for (fan_in, fan_out) in dims:
        key, kw, kb = jax.random.split(key, 3)
        bound = 1.0 / jnp.sqrt(jnp.float32(fan_in))
        w = jax.random.uniform(kw, (fan_in, fan_out), jnp.float32, -bound, bound)
        b = jax.random.uniform(kb, (fan_out,), jnp.float32, -bound, bound)
        params.append((w, b))
    return tuple(params)


def _reference_forward(t, params):
    h = t.astype(jnp.float32)
    (w0, b0), (w1, b1), (w2, b2), (w3, b3) = params
    h = jnp.tanh(h @ w0 + b0)
    h = jnp.tanh(h @ w1 + b1)
    h = jnp.tanh(h @ w2 + b2)
    return h @ w3 + b3


if __name__ == "__main__":
    key = jax.random.PRNGKey(0)
    params = init_params(key)
    packed = pack_params(params)

    # Small batches of time points, shape (N, 1) like the PyTorch module expects.
    for n_points in (8, 200):
        t = jnp.linspace(0.0, 4.0, n_points, dtype=jnp.float32).reshape(-1, 1)
        out = jax.block_until_ready(damped_oscillator_forward(t, packed))
        ref = _reference_forward(t, params)
        assert out.shape == (n_points, 1)
        assert jnp.allclose(out, ref, atol=1e-5, rtol=1e-5), "mismatch vs JAX reference"

    print("KERNEL_OK")
</pallas_src>

<mosaic_0001>
module attributes {stable_mosaic.version = 11 : i64} {
  func.func @_mlp_kernel(%arg0: i32, %arg1: memref<8x128xf32, #tpu.memory_space<vmem>>, %arg2: memref<9xf32, #tpu.memory_space<smem>>, %arg3: memref<9xf32, #tpu.memory_space<smem>>, %arg4: memref<81xf32, #tpu.memory_space<smem>>, %arg5: memref<9xf32, #tpu.memory_space<smem>>, %arg6: memref<81xf32, #tpu.memory_space<smem>>, %arg7: memref<9xf32, #tpu.memory_space<smem>>, %arg8: memref<9xf32, #tpu.memory_space<smem>>, %arg9: memref<1xf32, #tpu.memory_space<smem>>, %arg10: memref<8x128xf32, #tpu.memory_space<vmem>>) attributes {dimension_semantics = [#tpu.dimension_semantics<parallel>], iteration_bounds = array<i64: 1>, scalar_prefetch = 0 : i64, scratch_operands = 0 : i64, tpu.core_type = #tpu.core_type<tc>, window_params = [{transform_indices = @transform_0, window_bounds = array<i64: 8, 128>}, {transform_indices = @transform_1, window_bounds = array<i64: 9>}, {transform_indices = @transform_2, window_bounds = array<i64: 9>}, {transform_indices = @transform_3, window_bounds = array<i64: 81>}, {transform_indices = @transform_4, window_bounds = array<i64: 9>}, {transform_indices = @transform_5, window_bounds = array<i64: 81>}, {transform_indices = @transform_6, window_bounds = array<i64: 9>}, {transform_indices = @transform_7, window_bounds = array<i64: 9>}, {transform_indices = @transform_8, window_bounds = array<i64: 1>}, {transform_indices = @transform_9, window_bounds = array<i64: 8, 128>}]} {
    %c0 = arith.constant 0 : index
    %c0_0 = arith.constant 0 : index
    %0 = vector.load %arg1[%c0, %c0_0] : memref<8x128xf32, #tpu.memory_space<vmem>>, vector<8x128xf32>
    %c0_1 = arith.constant 0 : index
    %1 = memref.load %arg2[%c0_1] : memref<9xf32, #tpu.memory_space<smem>>
    %2 = vector.broadcast %1 : f32 to vector<8x128xf32>
    %3 = arith.mulf %2, %0 : vector<8x128xf32>
    %c0_2 = arith.constant 0 : index
    %4 = memref.load %arg3[%c0_2] : memref<9xf32, #tpu.memory_space<smem>>
    %5 = vector.broadcast %4 : f32 to vector<8x128xf32>
    %6 = arith.addf %3, %5 : vector<8x128xf32>
    %7 = math.tanh %6 : vector<8x128xf32>
    %c1 = arith.constant 1 : index
    %8 = memref.load %arg2[%c1] : memref<9xf32, #tpu.memory_space<smem>>
    %9 = vector.broadcast %8 : f32 to vector<8x128xf32>
    %10 = arith.mulf %9, %0 : vector<8x128xf32>
    %c1_3 = arith.constant 1 : index
    %11 = memref.load %arg3[%c1_3] : memref<9xf32, #tpu.memory_space<smem>>
    %12 = vector.broadcast %11 : f32 to vector<8x128xf32>
    %13 = arith.addf %10, %12 : vector<8x128xf32>
    %14 = math.tanh %13 : vector<8x128xf32>
    %c2 = arith.constant 2 : index
    %15 = memref.load %arg2[%c2] : memref<9xf32, #tpu.memory_space<smem>>
    %16 = vector.broadcast %15 : f32 to vector<8x128xf32>
    %17 = arith.mulf %16, %0 : vector<8x128xf32>
    %c2_4 = arith.constant 2 : index
    %18 = memref.load %arg3[%c2_4] : memref<9xf32, #tpu.memory_space<smem>>
    %19 = vector.broadcast %18 : f32 to vector<8x128xf32>
    %20 = arith.addf %17, %19 : vector<8x128xf32>
    %21 = math.tanh %20 : vector<8x128xf32>
    %c3 = arith.constant 3 : index
    %22 = memref.load %arg2[%c3] : memref<9xf32, #tpu.memory_space<smem>>
    %23 = vector.broadcast %22 : f32 to vector<8x128xf32>
    %24 = arith.mulf %23, %0 : vector<8x128xf32>
    %c3_5 = arith.constant 3 : index
    %25 = memref.load %arg3[%c3_5] : memref<9xf32, #tpu.memory_space<smem>>
    %26 = vector.broadcast %25 : f32 to vector<8x128xf32>
    %27 = arith.addf %24, %26 : vector<8x128xf32>
    %28 = math.tanh %27 : vector<8x128xf32>
    %c4 = arith.constant 4 : index
    %29 = memref.load %arg2[%c4] : memref<9xf32, #tpu.memory_space<smem>>
    %30 = vector.broadcast %29 : f32 to vector<8x128xf32>
    %31 = arith.mulf %30, %0 : vector<8x128xf32>
    %c4_6 = arith.constant 4 : index
    %32 = memref.load %arg3[%c4_6] : memref<9xf32, #tpu.memory_space<smem>>
    %33 = vector.broadcast %32 : f32 to vector<8x128xf32>
    %34 = arith.addf %31, %33 : vector<8x128xf32>
    %35 = math.tanh %34 : vector<8x128xf32>
    %c5 = arith.constant 5 : index
    %36 = memref.load %arg2[%c5] : memref<9xf32, #tpu.memory_space<smem>>
    %37 = vector.broadcast %36 : f32 to vector<8x128xf32>
    %38 = arith.mulf %37, %0 : vector<8x128xf32>
    %c5_7 = arith.constant 5 : index
    %39 = memref.load %arg3[%c5_7] : memref<9xf32, #tpu.memory_space<smem>>
    %40 = vector.broadcast %39 : f32 to vector<8x128xf32>
    %41 = arith.addf %38, %40 : vector<8x128xf32>
    %42 = math.tanh %41 : vector<8x128xf32>
    %c6 = arith.constant 6 : index
    %43 = memref.load %arg2[%c6] : memref<9xf32, #tpu.memory_space<smem>>
    %44 = vector.broadcast %43 : f32 to vector<8x128xf32>
    %45 = arith.mulf %44, %0 : vector<8x128xf32>
    %c6_8 = arith.constant 6 : index
    %46 = memref.load %arg3[%c6_8] : memref<9xf32, #tpu.memory_space<smem>>
    %47 = vector.broadcast %46 : f32 to vector<8x128xf32>
    %48 = arith.addf %45, %47 : vector<8x128xf32>
    %49 = math.tanh %48 : vector<8x128xf32>
    %c7 = arith.constant 7 : index
    %50 = memref.load %arg2[%c7] : memref<9xf32, #tpu.memory_space<smem>>
    %51 = vector.broadcast %50 : f32 to vector<8x128xf32>
    %52 = arith.mulf %51, %0 : vector<8x128xf32>
    %c7_9 = arith.constant 7 : index
    %53 = memref.load %arg3[%c7_9] : memref<9xf32, #tpu.memory_space<smem>>
    %54 = vector.broadcast %53 : f32 to vector<8x128xf32>
    %55 = arith.addf %52, %54 : vector<8x128xf32>
    %56 = math.tanh %55 : vector<8x128xf32>
    %c8 = arith.constant 8 : index
    %57 = memref.load %arg2[%c8] : memref<9xf32, #tpu.memory_space<smem>>
    %58 = vector.broadcast %57 : f32 to vector<8x128xf32>
    %59 = arith.mulf %58, %0 : vector<8x128xf32>
    %c8_10 = arith.constant 8 : index
    %60 = memref.load %arg3[%c8_10] : memref<9xf32, #tpu.memory_space<smem>>
    %61 = vector.broadcast %60 : f32 to vector<8x128xf32>
    %62 = arith.addf %59, %61 : vector<8x128xf32>
    %63 = math.tanh %62 : vector<8x128xf32>
    %c0_11 = arith.constant 0 : index
    %64 = memref.load %arg4[%c0_11] : memref<81xf32, #tpu.memory_space<smem>>
    %65 = vector.broadcast %64 : f32 to vector<8x128xf32>
    %66 = arith.mulf %7, %65 : vector<8x128xf32>
    %c9 = arith.constant 9 : index
    %67 = memref.load %arg4[%c9] : memref<81xf32, #tpu.memory_space<smem>>
    %68 = vector.broadcast %67 : f32 to vector<8x128xf32>
    %69 = arith.mulf %14, %68 : vector<8x128xf32>
    %70 = arith.addf %66, %69 : vector<8x128xf32>
    %c18 = arith.constant 18 : index
    %71 = memref.load %arg4[%c18] : memref<81xf32, #tpu.memory_space<smem>>
    %72 = vector.broadcast %71 : f32 to vector<8x128xf32>
    %73 = arith.mulf %21, %72 : vector<8x128xf32>
    %74 = arith.addf %70, %73 : vector<8x128xf32>
    %c27 = arith.constant 27 : index
    %75 = memref.load %arg4[%c27] : memref<81xf32, #tpu.memory_space<smem>>
    %76 = vector.broadcast %75 : f32 to vector<8x128xf32>
    %77 = arith.mulf %28, %76 : vector<8x128xf32>
    %78 = arith.addf %74, %77 : vector<8x128xf32>
    %c36 = arith.constant 36 : index
    %79 = memref.load %arg4[%c36] : memref<81xf32, #tpu.memory_space<smem>>
    %80 = vector.broadcast %79 : f32 to vector<8x128xf32>
    %81 = arith.mulf %35, %80 : vector<8x128xf32>
    %82 = arith.addf %78, %81 : vector<8x128xf32>
    %c45 = arith.constant 45 : index
    %83 = memref.load %arg4[%c45] : memref<81xf32, #tpu.memory_space<smem>>
    %84 = vector.broadcast %83 : f32 to vector<8x128xf32>
    %85 = arith.mulf %42, %84 : vector<8x128xf32>
    %86 = arith.addf %82, %85 : vector<8x128xf32>
    %c54 = arith.constant 54 : index
    %87 = memref.load %arg4[%c54] : memref<81xf32, #tpu.memory_space<smem>>
    %88 = vector.broadcast %87 : f32 to vector<8x128xf32>
    %89 = arith.mulf %49, %88 : vector<8x128xf32>
    %90 = arith.addf %86, %89 : vector<8x128xf32>
    %c63 = arith.constant 63 : index
    %91 = memref.load %arg4[%c63] : memref<81xf32, #tpu.memory_space<smem>>
    %92 = vector.broadcast %91 : f32 to vector<8x128xf32>
    %93 = arith.mulf %56, %92 : vector<8x128xf32>
    %94 = arith.addf %90, %93 : vector<8x128xf32>
    %c72 = arith.constant 72 : index
    %95 = memref.load %arg4[%c72] : memref<81xf32, #tpu.memory_space<smem>>
    %96 = vector.broadcast %95 : f32 to vector<8x128xf32>
    %97 = arith.mulf %63, %96 : vector<8x128xf32>
    %98 = arith.addf %94, %97 : vector<8x128xf32>
    %c0_12 = arith.constant 0 : index
    %99 = memref.load %arg5[%c0_12] : memref<9xf32, #tpu.memory_space<smem>>
    %100 = vector.broadcast %99 : f32 to vector<8x128xf32>
    %101 = arith.addf %98, %100 : vector<8x128xf32>
    %102 = math.tanh %101 : vector<8x128xf32>
    %c1_13 = arith.constant 1 : index
    %103 = memref.load %arg4[%c1_13] : memref<81xf32, #tpu.memory_space<smem>>
    %104 = vector.broadcast %103 : f32 to vector<8x128xf32>
    %105 = arith.mulf %7, %104 : vector<8x128xf32>
    %c10 = arith.constant 10 : index
    %106 = memref.load %arg4[%c10] : memref<81xf32, #tpu.memory_space<smem>>
    %107 = vector.broadcast %106 : f32 to vector<8x128xf32>
    %108 = arith.mulf %14, %107 : vector<8x128xf32>
    %109 = arith.addf %105, %108 : vector<8x128xf32>
    %c19 = arith.constant 19 : index
    %110 = memref.load %arg4[%c19] : memref<81xf32, #tpu.memory_space<smem>>
    %111 = vector.broadcast %110 : f32 to vector<8x128xf32>
    %112 = arith.mulf %21, %111 : vector<8x128xf32>
    %113 = arith.addf %109, %112 : vector<8x128xf32>
    %c28 = arith.constant 28 : index
    %114 = memref.load %arg4[%c28] : memref<81xf32, #tpu.memory_space<smem>>
    %115 = vector.broadcast %114 : f32 to vector<8x128xf32>
    %116 = arith.mulf %28, %115 : vector<8x128xf32>
    %117 = arith.addf %113, %116 : vector<8x128xf32>
    %c37 = arith.constant 37 : index
    %118 = memref.load %arg4[%c37] : memref<81xf32, #tpu.memory_space<smem>>
    %119 = vector.broadcast %118 : f32 to vector<8x128xf32>
    %120 = arith.mulf %35, %119 : vector<8x128xf32>
    %121 = arith.addf %117, %120 : vector<8x128xf32>
    %c46 = arith.constant 46 : index
    %122 = memref.load %arg4[%c46] : memref<81xf32, #tpu.memory_space<smem>>
    %123 = vector.broadcast %122 : f32 to vector<8x128xf32>
    %124 = arith.mulf %42, %123 : vector<8x128xf32>
    %125 = arith.addf %121, %124 : vector<8x128xf32>
    %c55 = arith.constant 55 : index
    %126 = memref.load %arg4[%c55] : memref<81xf32, #tpu.memory_space<smem>>
    %127 = vector.broadcast %126 : f32 to vector<8x128xf32>
    %128 = arith.mulf %49, %127 : vector<8x128xf32>
    %129 = arith.addf %125, %128 : vector<8x128xf32>
    %c64 = arith.constant 64 : index
    %130 = memref.load %arg4[%c64] : memref<81xf32, #tpu.memory_space<smem>>
    %131 = vector.broadcast %130 : f32 to vector<8x128xf32>
    %132 = arith.mulf %56, %131 : vector<8x128xf32>
    %133 = arith.addf %129, %132 : vector<8x128xf32>
    %c73 = arith.constant 73 : index
    %134 = memref.load %arg4[%c73] : memref<81xf32, #tpu.memory_space<smem>>
    %135 = vector.broadcast %134 : f32 to vector<8x128xf32>
    %136 = arith.mulf %63, %135 : vector<8x128xf32>
    %137 = arith.addf %133, %136 : vector<8x128xf32>
    %c1_14 = arith.constant 1 : index
    %138 = memref.load %arg5[%c1_14] : memref<9xf32, #tpu.memory_space<smem>>
    %139 = vector.broadcast %138 : f32 to vector<8x128xf32>
    %140 = arith.addf %137, %139 : vector<8x128xf32>
    %141 = math.tanh %140 : vector<8x128xf32>
    %c2_15 = arith.constant 2 : index
    %142 = memref.load %arg4[%c2_15] : memref<81xf32, #tpu.memory_space<smem>>
    %143 = vector.broadcast %142 : f32 to vector<8x128xf32>
    %144 = arith.mulf %7, %143 : vector<8x128xf32>
    %c11 = arith.constant 11 : index
    %145 = memref.load %arg4[%c11] : memref<81xf32, #tpu.memory_space<smem>>
    %146 = vector.broadcast %145 : f32 to vector<8x128xf32>
    %147 = arith.mulf %14, %146 : vector<8x128xf32>
    %148 = arith.addf %144, %147 : vector<8x128xf32>
    %c20 = arith.constant 20 : index
    %149 = memref.load %arg4[%c20] : memref<81xf32, #tpu.memory_space<smem>>
    %150 = vector.broadcast %149 : f32 to vector<8x128xf32>
    %151 = arith.mulf %21, %150 : vector<8x128xf32>
    %152 = arith.addf %148, %151 : vector<8x128xf32>
    %c29 = arith.constant 29 : index
    %153 = memref.load %arg4[%c29] : memref<81xf32, #tpu.memory_space<smem>>
    %154 = vector.broadcast %153 : f32 to vector<8x128xf32>
    %155 = arith.mulf %28, %154 : vector<8x128xf32>
    %156 = arith.addf %152, %155 : vector<8x128xf32>
    %c38 = arith.constant 38 : index
    %157 = memref.load %arg4[%c38] : memref<81xf32, #tpu.memory_space<smem>>
    %158 = vector.broadcast %157 : f32 to vector<8x128xf32>
    %159 = arith.mulf %35, %158 : vector<8x128xf32>
    %160 = arith.addf %156, %159 : vector<8x128xf32>
    %c47 = arith.constant 47 : index
    %161 = memref.load %arg4[%c47] : memref<81xf32, #tpu.memory_space<smem>>
    %162 = vector.broadcast %161 : f32 to vector<8x128xf32>
    %163 = arith.mulf %42, %162 : vector<8x128xf32>
    %164 = arith.addf %160, %163 : vector<8x128xf32>
    %c56 = arith.constant 56 : index
    %165 = memref.load %arg4[%c56] : memref<81xf32, #tpu.memory_space<smem>>
    %166 = vector.broadcast %165 : f32 to vector<8x128xf32>
    %167 = arith.mulf %49, %166 : vector<8x128xf32>
    %168 = arith.addf %164, %167 : vector<8x128xf32>
    %c65 = arith.constant 65 : index
    %169 = memref.load %arg4[%c65] : memref<81xf32, #tpu.memory_space<smem>>
    %170 = vector.broadcast %169 : f32 to vector<8x128xf32>
    %171 = arith.mulf %56, %170 : vector<8x128xf32>
    %172 = arith.addf %168, %171 : vector<8x128xf32>
    %c74 = arith.constant 74 : index
    %173 = memref.load %arg4[%c74] : memref<81xf32, #tpu.memory_space<smem>>
    %174 = vector.broadcast %173 : f32 to vector<8x128xf32>
    %175 = arith.mulf %63, %174 : vector<8x128xf32>
    %176 = arith.addf %172, %175 : vector<8x128xf32>
    %c2_16 = arith.constant 2 : index
    %177 = memref.load %arg5[%c2_16] : memref<9xf32, #tpu.memory_space<smem>>
    %178 = vector.broadcast %177 : f32 to vector<8x128xf32>
    %179 = arith.addf %176, %178 : vector<8x128xf32>
    %180 = math.tanh %179 : vector<8x128xf32>
    %c3_17 = arith.constant 3 : index
    %181 = memref.load %arg4[%c3_17] : memref<81xf32, #tpu.memory_space<smem>>
    %182 = vector.broadcast %181 : f32 to vector<8x128xf32>
    %183 = arith.mulf %7, %182 : vector<8x128xf32>
    %c12 = arith.constant 12 : index
    %184 = memref.load %arg4[%c12] : memref<81xf32, #tpu.memory_space<smem>>
    %185 = vector.broadcast %184 : f32 to vector<8x128xf32>
    %186 = arith.mulf %14, %185 : vector<8x128xf32>
    %187 = arith.addf %183, %186 : vector<8x128xf32>
    %c21 = arith.constant 21 : index
    %188 = memref.load %arg4[%c21] : memref<81xf32, #tpu.memory_space<smem>>
    %189 = vector.broadcast %188 : f32 to vector<8x128xf32>
    %190 = arith.mulf %21, %189 : vector<8x128xf32>
    %191 = arith.addf %187, %190 : vector<8x128xf32>
    %c30 = arith.constant 30 : index
    %192 = memref.load %arg4[%c30] : memref<81xf32, #tpu.memory_space<smem>>
    %193 = vector.broadcast %192 : f32 to vector<8x128xf32>
    %194 = arith.mulf %28, %193 : vector<8x128xf32>
    %195 = arith.addf %191, %194 : vector<8x128xf32>
    %c39 = arith.constant 39 : index
    %196 = memref.load %arg4[%c39] : memref<81xf32, #tpu.memory_space<smem>>
    %197 = vector.broadcast %196 : f32 to vector<8x128xf32>
    %198 = arith.mulf %35, %197 : vector<8x128xf32>
    %199 = arith.addf %195, %198 : vector<8x128xf32>
    %c48 = arith.constant 48 : index
    %200 = memref.load %arg4[%c48] : memref<81xf32, #tpu.memory_space<smem>>
    %201 = vector.broadcast %200 : f32 to vector<8x128xf32>
    %202 = arith.mulf %42, %201 : vector<8x128xf32>
    %203 = arith.addf %199, %202 : vector<8x128xf32>
    %c57 = arith.constant 57 : index
    %204 = memref.load %arg4[%c57] : memref<81xf32, #tpu.memory_space<smem>>
    %205 = vector.broadcast %204 : f32 to vector<8x128xf32>
    %206 = arith.mulf %49, %205 : vector<8x128xf32>
    %207 = arith.addf %203, %206 : vector<8x128xf32>
    %c66 = arith.constant 66 : index
    %208 = memref.load %arg4[%c66] : memref<81xf32, #tpu.memory_space<smem>>
    %209 = vector.broadcast %208 : f32 to vector<8x128xf32>
    %210 = arith.mulf %56, %209 : vector<8x128xf32>
    %211 = arith.addf %207, %210 : vector<8x128xf32>
    %c75 = arith.constant 75 : index
    %212 = memref.load %arg4[%c75] : memref<81xf32, #tpu.memory_space<smem>>
    %213 = vector.broadcast %212 : f32 to vector<8x128xf32>
    %214 = arith.mulf %63, %213 : vector<8x128xf32>
    %215 = arith.addf %211, %214 : vector<8x128xf32>
    %c3_18 = arith.constant 3 : index
    %216 = memref.load %arg5[%c3_18] : memref<9xf32, #tpu.memory_space<smem>>
    %217 = vector.broadcast %216 : f32 to vector<8x128xf32>
    %218 = arith.addf %215, %217 : vector<8x128xf32>
    %219 = math.tanh %218 : vector<8x128xf32>
    %c4_19 = arith.constant 4 : index
    %220 = memref.load %arg4[%c4_19] : memref<81xf32, #tpu.memory_space<smem>>
    %221 = vector.broadcast %220 : f32 to vector<8x128xf32>
    %222 = arith.mulf %7, %221 : vector<8x128xf32>
    %c13 = arith.constant 13 : index
    %223 = memref.load %arg4[%c13] : memref<81xf32, #tpu.memory_space<smem>>
    %224 = vector.broadcast %223 : f32 to vector<8x128xf32>
    %225 = arith.mulf %14, %224 : vector<8x128xf32>
    %226 = arith.addf %222, %225 : vector<8x128xf32>
    %c22 = arith.constant 22 : index
    %227 = memref.load %arg4[%c22] : memref<81xf32, #tpu.memory_space<smem>>
    %228 = vector.broadcast %227 : f32 to vector<8x128xf32>
    %229 = arith.mulf %21, %228 : vector<8x128xf32>
    %230 = arith.addf %226, %229 : vector<8x128xf32>
    %c31 = arith.constant 31 : index
    %231 = memref.load %arg4[%c31] : memref<81xf32, #tpu.memory_space<smem>>
    %232 = vector.broadcast %231 : f32 to vector<8x128xf32>
    %233 = arith.mulf %28, %232 : vector<8x128xf32>
    %234 = arith.addf %230, %233 : vector<8x128xf32>
    %c40 = arith.constant 40 : index
    %235 = memref.load %arg4[%c40] : memref<81xf32, #tpu.memory_space<smem>>
    %236 = vector.broadcast %235 : f32 to vector<8x128xf32>
    %237 = arith.mulf %35, %236 : vector<8x128xf32>
    %238 = arith.addf %234, %237 : vector<8x128xf32>
    %c49 = arith.constant 49 : index
    %239 = memref.load %arg4[%c49] : memref<81xf32, #tpu.memory_space<smem>>
    %240 = vector.broadcast %239 : f32 to vector<8x128xf32>
    %241 = arith.mulf %42, %240 : vector<8x128xf32>
    %242 = arith.addf %238, %241 : vector<8x128xf32>
    %c58 = arith.constant 58 : index
    %243 = memref.load %arg4[%c58] : memref<81xf32, #tpu.memory_space<smem>>
    %244 = vector.broadcast %243 : f32 to vector<8x128xf32>
    %245 = arith.mulf %49, %244 : vector<8x128xf32>
    %246 = arith.addf %242, %245 : vector<8x128xf32>
    %c67 = arith.constant 67 : index
    %247 = memref.load %arg4[%c67] : memref<81xf32, #tpu.memory_space<smem>>
    %248 = vector.broadcast %247 : f32 to vector<8x128xf32>
    %249 = arith.mulf %56, %248 : vector<8x128xf32>
    %250 = arith.addf %246, %249 : vector<8x128xf32>
    %c76 = arith.constant 76 : index
    %251 = memref.load %arg4[%c76] : memref<81xf32, #tpu.memory_space<smem>>
    %252 = vector.broadcast %251 : f32 to vector<8x128xf32>
    %253 = arith.mulf %63, %252 : vector<8x128xf32>
    %254 = arith.addf %250, %253 : vector<8x128xf32>
    %c4_20 = arith.constant 4 : index
    %255 = memref.load %arg5[%c4_20] : memref<9xf32, #tpu.memory_space<smem>>
    %256 = vector.broadcast %255 : f32 to vector<8x128xf32>
    %257 = arith.addf %254, %256 : vector<8x128xf32>
    %258 = math.tanh %257 : vector<8x128xf32>
    %c5_21 = arith.constant 5 : index
    %259 = memref.load %arg4[%c5_21] : memref<81xf32, #tpu.memory_space<smem>>
    %260 = vector.broadcast %259 : f32 to vector<8x128xf32>
    %261 = arith.mulf %7, %260 : vector<8x128xf32>
    %c14 = arith.constant 14 : index
    %262 = memref.load %arg4[%c14] : memref<81xf32, #tpu.memory_space<smem>>
    %263 = vector.broadcast %262 : f32 to vector<8x128xf32>
    %264 = arith.mulf %14, %263 : vector<8x128xf32>
    %265 = arith.addf %261, %264 : vector<8x128xf32>
    %c23 = arith.constant 23 : index
    %266 = memref.load %arg4[%c23] : memref<81xf32, #tpu.memory_space<smem>>
    %267 = vector.broadcast %266 : f32 to vector<8x128xf32>
    %268 = arith.mulf %21, %267 : vector<8x128xf32>
    %269 = arith.addf %265, %268 : vector<8x128xf32>
    %c32 = arith.constant 32 : index
    %270 = memref.load %arg4[%c32] : memref<81xf32, #tpu.memory_space<smem>>
    %271 = vector.broadcast %270 : f32 to vector<8x128xf32>
    %272 = arith.mulf %28, %271 : vector<8x128xf32>
    %273 = arith.addf %269, %272 : vector<8x128xf32>
    %c41 = arith.constant 41 : index
    %274 = memref.load %arg4[%c41] : memref<81xf32, #tpu.memory_space<smem>>
    %275 = vector.broadcast %274 : f32 to vector<8x128xf32>
    %276 = arith.mulf %35, %275 : vector<8x128xf32>
    %277 = arith.addf %273, %276 : vector<8x128xf32>
    %c50 = arith.constant 50 : index
    %278 = memref.load %arg4[%c50] : memref<81xf32, #tpu.memory_space<smem>>
    %279 = vector.broadcast %278 : f32 to vector<8x128xf32>
    %280 = arith.mulf %42, %279 : vector<8x128xf32>
    %281 = arith.addf %277, %280 : vector<8x128xf32>
    %c59 = arith.constant 59 : index
    %282 = memref.load %arg4[%c59] : memref<81xf32, #tpu.memory_space<smem>>
    %283 = vector.broadcast %282 : f32 to vector<8x128xf32>
    %284 = arith.mulf %49, %283 : vector<8x128xf32>
    %285 = arith.addf %281, %284 : vector<8x128xf32>
    %c68 = arith.constant 68 : index
    %286 = memref.load %arg4[%c68] : memref<81xf32, #tpu.memory_space<smem>>
    %287 = vector.broadcast %286 : f32 to vector<8x128xf32>
    %288 = arith.mulf %56, %287 : vector<8x128xf32>
    %289 = arith.addf %285, %288 : vector<8x128xf32>
    %c77 = arith.constant 77 : index
    %290 = memref.load %arg4[%c77] : memref<81xf32, #tpu.memory_space<smem>>
    %291 = vector.broadcast %290 : f32 to vector<8x128xf32>
    %292 = arith.mulf %63, %291 : vector<8x128xf32>
    %293 = arith.addf %289, %292 : vector<8x128xf32>
    %c5_22 = arith.constant 5 : index
    %294 = memref.load %arg5[%c5_22] : memref<9xf32, #tpu.memory_space<smem>>
    %295 = vector.broadcast %294 : f32 to vector<8x128xf32>
    %296 = arith.addf %293, %295 : vector<8x128xf32>
    %297 = math.tanh %296 : vector<8x128xf32>
    %c6_23 = arith.constant 6 : index
    %298 = memref.load %arg4[%c6_23] : memref<81xf32, #tpu.memory_space<smem>>
    %299 = vector.broadcast %298 : f32 to vector<8x128xf32>
    %300 = arith.mulf %7, %299 : vector<8x128xf32>
    %c15 = arith.constant 15 : index
    %301 = memref.load %arg4[%c15] : memref<81xf32, #tpu.memory_space<smem>>
    %302 = vector.broadcast %301 : f32 to vector<8x128xf32>
    %303 = arith.mulf %14, %302 : vector<8x128xf32>
    %304 = arith.addf %300, %303 : vector<8x128xf32>
    %c24 = arith.constant 24 : index
    %305 = memref.load %arg4[%c24] : memref<81xf32, #tpu.memory_space<smem>>
    %306 = vector.broadcast %305 : f32 to vector<8x128xf32>
    %307 = arith.mulf %21, %306 : vector<8x128xf32>
    %308 = arith.addf %304, %307 : vector<8x128xf32>
    %c33 = arith.constant 33 : index
    %309 = memref.load %arg4[%c33] : memref<81xf32, #tpu.memory_space<smem>>
    %310 = vector.broadcast %309 : f32 to vector<8x128xf32>
    %311 = arith.mulf %28, %310 : vector<8x128xf32>
    %312 = arith.addf %308, %311 : vector<8x128xf32>
    %c42 = arith.constant 42 : index
    %313 = memref.load %arg4[%c42] : memref<81xf32, #tpu.memory_space<smem>>
    %314 = vector.broadcast %313 : f32 to vector<8x128xf32>
    %315 = arith.mulf %35, %314 : vector<8x128xf32>
    %316 = arith.addf %312, %315 : vector<8x128xf32>
    %c51 = arith.constant 51 : index
    %317 = memref.load %arg4[%c51] : memref<81xf32, #tpu.memory_space<smem>>
    %318 = vector.broadcast %317 : f32 to vector<8x128xf32>
    %319 = arith.mulf %42, %318 : vector<8x128xf32>
    %320 = arith.addf %316, %319 : vector<8x128xf32>
    %c60 = arith.constant 60 : index
    %321 = memref.load %arg4[%c60] : memref<81xf32, #tpu.memory_space<smem>>
    %322 = vector.broadcast %321 : f32 to vector<8x128xf32>
    %323 = arith.mulf %49, %322 : vector<8x128xf32>
    %324 = arith.addf %320, %323 : vector<8x128xf32>
    %c69 = arith.constant 69 : index
    %325 = memref.load %arg4[%c69] : memref<81xf32, #tpu.memory_space<smem>>
    %326 = vector.broadcast %325 : f32 to vector<8x128xf32>
    %327 = arith.mulf %56, %326 : vector<8x128xf32>
    %328 = arith.addf %324, %327 : vector<8x128xf32>
    %c78 = arith.constant 78 : index
    %329 = memref.load %arg4[%c78] : memref<81xf32, #tpu.memory_space<smem>>
    %330 = vector.broadcast %329 : f32 to vector<8x128xf32>
    %331 = arith.mulf %63, %330 : vector<8x128xf32>
    %332 = arith.addf %328, %331 : vector<8x128xf32>
    %c6_24 = arith.constant 6 : index
    %333 = memref.load %arg5[%c6_24] : memref<9xf32, #tpu.memory_space<smem>>
    %334 = vector.broadcast %333 : f32 to vector<8x128xf32>
    %335 = arith.addf %332, %334 : vector<8x128xf32>
    %336 = math.tanh %335 : vector<8x128xf32>
    %c7_25 = arith.constant 7 : index
    %337 = memref.load %arg4[%c7_25] : memref<81xf32, #tpu.memory_space<smem>>
    %338 = vector.broadcast %337 : f32 to vector<8x128xf32>
    %339 = arith.mulf %7, %338 : vector<8x128xf32>
    %c16 = arith.constant 16 : index
    %340 = memref.load %arg4[%c16] : memref<81xf32, #tpu.memory_space<smem>>
    %341 = vector.broadcast %340 : f32 to vector<8x128xf32>
    %342 = arith.mulf %14, %341 : vector<8x128xf32>
    %343 = arith.addf %339, %342 : vector<8x128xf32>
    %c25 = arith.constant 25 : index
    %344 = memref.load %arg4[%c25] : memref<81xf32, #tpu.memory_space<smem>>
    %345 = vector.broadcast %344 : f32 to vector<8x128xf32>
    %346 = arith.mulf %21, %345 : vector<8x128xf32>
    %347 = arith.addf %343, %346 : vector<8x128xf32>
    %c34 = arith.constant 34 : index
    %348 = memref.load %arg4[%c34] : memref<81xf32, #tpu.memory_space<smem>>
    %349 = vector.broadcast %348 : f32 to vector<8x128xf32>
    %350 = arith.mulf %28, %349 : vector<8x128xf32>
    %351 = arith.addf %347, %350 : vector<8x128xf32>
    %c43 = arith.constant 43 : index
    %352 = memref.load %arg4[%c43] : memref<81xf32, #tpu.memory_space<smem>>
    %353 = vector.broadcast %352 : f32 to vector<8x128xf32>
    %354 = arith.mulf %35, %353 : vector<8x128xf32>
    %355 = arith.addf %351, %354 : vector<8x128xf32>
    %c52 = arith.constant 52 : index
    %356 = memref.load %arg4[%c52] : memref<81xf32, #tpu.memory_space<smem>>
    %357 = vector.broadcast %356 : f32 to vector<8x128xf32>
    %358 = arith.mulf %42, %357 : vector<8x128xf32>
    %359 = arith.addf %355, %358 : vector<8x128xf32>
    %c61 = arith.constant 61 : index
    %360 = memref.load %arg4[%c61] : memref<81xf32, #tpu.memory_space<smem>>
    %361 = vector.broadcast %360 : f32 to vector<8x128xf32>
    %362 = arith.mulf %49, %361 : vector<8x128xf32>
    %363 = arith.addf %359, %362 : vector<8x128xf32>
    %c70 = arith.constant 70 : index
    %364 = memref.load %arg4[%c70] : memref<81xf32, #tpu.memory_space<smem>>
    %365 = vector.broadcast %364 : f32 to vector<8x128xf32>
    %366 = arith.mulf %56, %365 : vector<8x128xf32>
    %367 = arith.addf %363, %366 : vector<8x128xf32>
    %c79 = arith.constant 79 : index
    %368 = memref.load %arg4[%c79] : memref<81xf32, #tpu.memory_space<smem>>
    %369 = vector.broadcast %368 : f32 to vector<8x128xf32>
    %370 = arith.mulf %63, %369 : vector<8x128xf32>
    %371 = arith.addf %367, %370 : vector<8x128xf32>
    %c7_26 = arith.constant 7 : index
    %372 = memref.load %arg5[%c7_26] : memref<9xf32, #tpu.memory_space<smem>>
    %373 = vector.broadcast %372 : f32 to vector<8x128xf32>
    %374 = arith.addf %371, %373 : vector<8x128xf32>
    %375 = math.tanh %374 : vector<8x128xf32>
    %c8_27 = arith.constant 8 : index
    %376 = memref.load %arg4[%c8_27] : memref<81xf32, #tpu.memory_space<smem>>
    %377 = vector.broadcast %376 : f32 to vector<8x128xf32>
    %378 = arith.mulf %7, %377 : vector<8x128xf32>
    %c17 = arith.constant 17 : index
    %379 = memref.load %arg4[%c17] : memref<81xf32, #tpu.memory_space<smem>>
    %380 = vector.broadcast %379 : f32 to vector<8x128xf32>
    %381 = arith.mulf %14, %380 : vector<8x128xf32>
    %382 = arith.addf %378, %381 : vector<8x128xf32>
    %c26 = arith.constant 26 : index
    %383 = memref.load %arg4[%c26] : memref<81xf32, #tpu.memory_space<smem>>
    %384 = vector.broadcast %383 : f32 to vector<8x128xf32>
    %385 = arith.mulf %21, %384 : vector<8x128xf32>
    %386 = arith.addf %382, %385 : vector<8x128xf32>
    %c35 = arith.constant 35 : index
    %387 = memref.load %arg4[%c35] : memref<81xf32, #tpu.memory_space<smem>>
    %388 = vector.broadcast %387 : f32 to vector<8x128xf32>
    %389 = arith.mulf %28, %388 : vector<8x128xf32>
    %390 = arith.addf %386, %389 : vector<8x128xf32>
    %c44 = arith.constant 44 : index
    %391 = memref.load %arg4[%c44] : memref<81xf32, #tpu.memory_space<smem>>
    %392 = vector.broadcast %391 : f32 to vector<8x128xf32>
    %393 = arith.mulf %35, %392 : vector<8x128xf32>
    %394 = arith.addf %390, %393 : vector<8x128xf32>
    %c53 = arith.constant 53 : index
    %395 = memref.load %arg4[%c53] : memref<81xf32, #tpu.memory_space<smem>>
    %396 = vector.broadcast %395 : f32 to vector<8x128xf32>
    %397 = arith.mulf %42, %396 : vector<8x128xf32>
    %398 = arith.addf %394, %397 : vector<8x128xf32>
    %c62 = arith.constant 62 : index
    %399 = memref.load %arg4[%c62] : memref<81xf32, #tpu.memory_space<smem>>
    %400 = vector.broadcast %399 : f32 to vector<8x128xf32>
    %401 = arith.mulf %49, %400 : vector<8x128xf32>
    %402 = arith.addf %398, %401 : vector<8x128xf32>
    %c71 = arith.constant 71 : index
    %403 = memref.load %arg4[%c71] : memref<81xf32, #tpu.memory_space<smem>>
    %404 = vector.broadcast %403 : f32 to vector<8x128xf32>
    %405 = arith.mulf %56, %404 : vector<8x128xf32>
    %406 = arith.addf %402, %405 : vector<8x128xf32>
    %c80 = arith.constant 80 : index
    %407 = memref.load %arg4[%c80] : memref<81xf32, #tpu.memory_space<smem>>
    %408 = vector.broadcast %407 : f32 to vector<8x128xf32>
    %409 = arith.mulf %63, %408 : vector<8x128xf32>
    %410 = arith.addf %406, %409 : vector<8x128xf32>
    %c8_28 = arith.constant 8 : index
    %411 = memref.load %arg5[%c8_28] : memref<9xf32, #tpu.memory_space<smem>>
    %412 = vector.broadcast %411 : f32 to vector<8x128xf32>
    %413 = arith.addf %410, %412 : vector<8x128xf32>
    %414 = math.tanh %413 : vector<8x128xf32>
    %c0_29 = arith.constant 0 : index
    %415 = memref.load %arg6[%c0_29] : memref<81xf32, #tpu.memory_space<smem>>
    %416 = vector.broadcast %415 : f32 to vector<8x128xf32>
    %417 = arith.mulf %102, %416 : vector<8x128xf32>
    %c9_30 = arith.constant 9 : index
    %418 = memref.load %arg6[%c9_30] : memref<81xf32, #tpu.memory_space<smem>>
    %419 = vector.broadcast %418 : f32 to vector<8x128xf32>
    %420 = arith.mulf %141, %419 : vector<8x128xf32>
    %421 = arith.addf %417, %420 : vector<8x128xf32>
    %c18_31 = arith.constant 18 : index
    %422 = memref.load %arg6[%c18_31] : memref<81xf32, #tpu.memory_space<smem>>
    %423 = vector.broadcast %422 : f32 to vector<8x128xf32>
    %424 = arith.mulf %180, %423 : vector<8x128xf32>
    %425 = arith.addf %421, %424 : vector<8x128xf32>
    %c27_32 = arith.constant 27 : index
    %426 = memref.load %arg6[%c27_32] : memref<81xf32, #tpu.memory_space<smem>>
    %427 = vector.broadcast %426 : f32 to vector<8x128xf32>
    %428 = arith.mulf %219, %427 : vector<8x128xf32>
    %429 = arith.addf %425, %428 : vector<8x128xf32>
    %c36_33 = arith.constant 36 : index
    %430 = memref.load %arg6[%c36_33] : memref<81xf32, #tpu.memory_space<smem>>
    %431 = vector.broadcast %430 : f32 to vector<8x128xf32>
    %432 = arith.mulf %258, %431 : vector<8x128xf32>
    %433 = arith.addf %429, %432 : vector<8x128xf32>
    %c45_34 = arith.constant 45 : index
    %434 = memref.load %arg6[%c45_34] : memref<81xf32, #tpu.memory_space<smem>>
    %435 = vector.broadcast %434 : f32 to vector<8x128xf32>
    %436 = arith.mulf %297, %435 : vector<8x128xf32>
    %437 = arith.addf %433, %436 : vector<8x128xf32>
    %c54_35 = arith.constant 54 : index
    %438 = memref.load %arg6[%c54_35] : memref<81xf32, #tpu.memory_space<smem>>
    %439 = vector.broadcast %438 : f32 to vector<8x128xf32>
    %440 = arith.mulf %336, %439 : vector<8x128xf32>
    %441 = arith.addf %437, %440 : vector<8x128xf32>
    %c63_36 = arith.constant 63 : index
    %442 = memref.load %arg6[%c63_36] : memref<81xf32, #tpu.memory_space<smem>>
    %443 = vector.broadcast %442 : f32 to vector<8x128xf32>
    %444 = arith.mulf %375, %443 : vector<8x128xf32>
    %445 = arith.addf %441, %444 : vector<8x128xf32>
    %c72_37 = arith.constant 72 : index
    %446 = memref.load %arg6[%c72_37] : memref<81xf32, #tpu.memory_space<smem>>
    %447 = vector.broadcast %446 : f32 to vector<8x128xf32>
    %448 = arith.mulf %414, %447 : vector<8x128xf32>
    %449 = arith.addf %445, %448 : vector<8x128xf32>
    %c0_38 = arith.constant 0 : index
    %450 = memref.load %arg7[%c0_38] : memref<9xf32, #tpu.memory_space<smem>>
    %451 = vector.broadcast %450 : f32 to vector<8x128xf32>
    %452 = arith.addf %449, %451 : vector<8x128xf32>
    %453 = math.tanh %452 : vector<8x128xf32>
    %c1_39 = arith.constant 1 : index
    %454 = memref.load %arg6[%c1_39] : memref<81xf32, #tpu.memory_space<smem>>
    %455 = vector.broadcast %454 : f32 to vector<8x128xf32>
    %456 = arith.mulf %102, %455 : vector<8x128xf32>
    %c10_40 = arith.constant 10 : index
    %457 = memref.load %arg6[%c10_40] : memref<81xf32, #tpu.memory_space<smem>>
    %458 = vector.broadcast %457 : f32 to vector<8x128xf32>
    %459 = arith.mulf %141, %458 : vector<8x128xf32>
    %460 = arith.addf %456, %459 : vector<8x128xf32>
    %c19_41 = arith.constant 19 : index
    %461 = memref.load %arg6[%c19_41] : memref<81xf32, #tpu.memory_space<smem>>
    %462 = vector.broadcast %461 : f32 to vector<8x128xf32>
    %463 = arith.mulf %180, %462 : vector<8x128xf32>
    %464 = arith.addf %460, %463 : vector<8x128xf32>
    %c28_42 = arith.constant 28 : index
    %465 = memref.load %arg6[%c28_42] : memref<81xf32, #tpu.memory_space<smem>>
    %466 = vector.broadcast %465 : f32 to vector<8x128xf32>
    %467 = arith.mulf %219, %466 : vector<8x128xf32>
    %468 = arith.addf %464, %467 : vector<8x128xf32>
    %c37_43 = arith.constant 37 : index
    %469 = memref.load %arg6[%c37_43] : memref<81xf32, #tpu.memory_space<smem>>
    %470 = vector.broadcast %469 : f32 to vector<8x128xf32>
    %471 = arith.mulf %258, %470 : vector<8x128xf32>
    %472 = arith.addf %468, %471 : vector<8x128xf32>
    %c46_44 = arith.constant 46 : index
    %473 = memref.load %arg6[%c46_44] : memref<81xf32, #tpu.memory_space<smem>>
    %474 = vector.broadcast %473 : f32 to vector<8x128xf32>
    %475 = arith.mulf %297, %474 : vector<8x128xf32>
    %476 = arith.addf %472, %475 : vector<8x128xf32>
    %c55_45 = arith.constant 55 : index
    %477 = memref.load %arg6[%c55_45] : memref<81xf32, #tpu.memory_space<smem>>
    %478 = vector.broadcast %477 : f32 to vector<8x128xf32>
    %479 = arith.mulf %336, %478 : vector<8x128xf32>
    %480 = arith.addf %476, %479 : vector<8x128xf32>
    %c64_46 = arith.constant 64 : index
    %481 = memref.load %arg6[%c64_46] : memref<81xf32, #tpu.memory_space<smem>>
    %482 = vector.broadcast %481 : f32 to vector<8x128xf32>
    %483 = arith.mulf %375, %482 : vector<8x128xf32>
    %484 = arith.addf %480, %483 : vector<8x128xf32>
    %c73_47 = arith.constant 73 : index
    %485 = memref.load %arg6[%c73_47] : memref<81xf32, #tpu.memory_space<smem>>
    %486 = vector.broadcast %485 : f32 to vector<8x128xf32>
    %487 = arith.mulf %414, %486 : vector<8x128xf32>
    %488 = arith.addf %484, %487 : vector<8x128xf32>
    %c1_48 = arith.constant 1 : index
    %489 = memref.load %arg7[%c1_48] : memref<9xf32, #tpu.memory_space<smem>>
    %490 = vector.broadcast %489 : f32 to vector<8x128xf32>
    %491 = arith.addf %488, %490 : vector<8x128xf32>
    %492 = math.tanh %491 : vector<8x128xf32>
    %c2_49 = arith.constant 2 : index
    %493 = memref.load %arg6[%c2_49] : memref<81xf32, #tpu.memory_space<smem>>
    %494 = vector.broadcast %493 : f32 to vector<8x128xf32>
    %495 = arith.mulf %102, %494 : vector<8x128xf32>
    %c11_50 = arith.constant 11 : index
    %496 = memref.load %arg6[%c11_50] : memref<81xf32, #tpu.memory_space<smem>>
    %497 = vector.broadcast %496 : f32 to vector<8x128xf32>
    %498 = arith.mulf %141, %497 : vector<8x128xf32>
    %499 = arith.addf %495, %498 : vector<8x128xf32>
    %c20_51 = arith.constant 20 : index
    %500 = memref.load %arg6[%c20_51] : memref<81xf32, #tpu.memory_space<smem>>
    %501 = vector.broadcast %500 : f32 to vector<8x128xf32>
    %502 = arith.mulf %180, %501 : vector<8x128xf32>
    %503 = arith.addf %499, %502 : vector<8x128xf32>
    %c29_52 = arith.constant 29 : index
    %504 = memref.load %arg6[%c29_52] : memref<81xf32, #tpu.memory_space<smem>>
    %505 = vector.broadcast %504 : f32 to vector<8x128xf32>
    %506 = arith.mulf %219, %505 : vector<8x128xf32>
    %507 = arith.addf %503, %506 : vector<8x128xf32>
    %c38_53 = arith.constant 38 : index
    %508 = memref.load %arg6[%c38_53] : memref<81xf32, #tpu.memory_space<smem>>
    %509 = vector.broadcast %508 : f32 to vector<8x128xf32>
    %510 = arith.mulf %258, %509 : vector<8x128xf32>
    %511 = arith.addf %507, %510 : vector<8x128xf32>
    %c47_54 = arith.constant 47 : index
    %512 = memref.load %arg6[%c47_54] : memref<81xf32, #tpu.memory_space<smem>>
    %513 = vector.broadcast %512 : f32 to vector<8x128xf32>
    %514 = arith.mulf %297, %513 : vector<8x128xf32>
    %515 = arith.addf %511, %514 : vector<8x128xf32>
    %c56_55 = arith.constant 56 : index
    %516 = memref.load %arg6[%c56_55] : memref<81xf32, #tpu.memory_space<smem>>
    %517 = vector.broadcast %516 : f32 to vector<8x128xf32>
    %518 = arith.mulf %336, %517 : vector<8x128xf32>
    %519 = arith.addf %515, %518 : vector<8x128xf32>
    %c65_56 = arith.constant 65 : index
    %520 = memref.load %arg6[%c65_56] : memref<81xf32, #tpu.memory_space<smem>>
    %521 = vector.broadcast %520 : f32 to vector<8x128xf32>
    %522 = arith.mulf %375, %521 : vector<8x128xf32>
    %523 = arith.addf %519, %522 : vector<8x128xf32>
    %c74_57 = arith.constant 74 : index
    %524 = memref.load %arg6[%c74_57] : memref<81xf32, #tpu.memory_space<smem>>
    %525 = vector.broadcast %524 : f32 to vector<8x128xf32>
    %526 = arith.mulf %414, %525 : vector<8x128xf32>
    %527 = arith.addf %523, %526 : vector<8x128xf32>
    %c2_58 = arith.constant 2 : index
    %528 = memref.load %arg7[%c2_58] : memref<9xf32, #tpu.memory_space<smem>>
    %529 = vector.broadcast %528 : f32 to vector<8x128xf32>
    %530 = arith.addf %527, %529 : vector<8x128xf32>
    %531 = math.tanh %530 : vector<8x128xf32>
    %c3_59 = arith.constant 3 : index
    %532 = memref.load %arg6[%c3_59] : memref<81xf32, #tpu.memory_space<smem>>
    %533 = vector.broadcast %532 : f32 to vector<8x128xf32>
    %534 = arith.mulf %102, %533 : vector<8x128xf32>
    %c12_60 = arith.constant 12 : index
    %535 = memref.load %arg6[%c12_60] : memref<81xf32, #tpu.memory_space<smem>>
    %536 = vector.broadcast %535 : f32 to vector<8x128xf32>
    %537 = arith.mulf %141, %536 : vector<8x128xf32>
    %538 = arith.addf %534, %537 : vector<8x128xf32>
    %c21_61 = arith.constant 21 : index
    %539 = memref.load %arg6[%c21_61] : memref<81xf32, #tpu.memory_space<smem>>
    %540 = vector.broadcast %539 : f32 to vector<8x128xf32>
    %541 = arith.mulf %180, %540 : vector<8x128xf32>
    %542 = arith.addf %538, %541 : vector<8x128xf32>
    %c30_62 = arith.constant 30 : index
    %543 = memref.load %arg6[%c30_62] : memref<81xf32, #tpu.memory_space<smem>>
    %544 = vector.broadcast %543 : f32 to vector<8x128xf32>
    %545 = arith.mulf %219, %544 : vector<8x128xf32>
    %546 = arith.addf %542, %545 : vector<8x128xf32>
    %c39_63 = arith.constant 39 : index
    %547 = memref.load %arg6[%c39_63] : memref<81xf32, #tpu.memory_space<smem>>
    %548 = vector.broadcast %547 : f32 to vector<8x128xf32>
    %549 = arith.mulf %258, %548 : vector<8x128xf32>
    %550 = arith.addf %546, %549 : vector<8x128xf32>
    %c48_64 = arith.constant 48 : index
    %551 = memref.load %arg6[%c48_64] : memref<81xf32, #tpu.memory_space<smem>>
    %552 = vector.broadcast %551 : f32 to vector<8x128xf32>
    %553 = arith.mulf %297, %552 : vector<8x128xf32>
    %554 = arith.addf %550, %553 : vector<8x128xf32>
    %c57_65 = arith.constant 57 : index
    %555 = memref.load %arg6[%c57_65] : memref<81xf32, #tpu.memory_space<smem>>
    %556 = vector.broadcast %555 : f32 to vector<8x128xf32>
    %557 = arith.mulf %336, %556 : vector<8x128xf32>
    %558 = arith.addf %554, %557 : vector<8x128xf32>
    %c66_66 = arith.constant 66 : index
    %559 = memref.load %arg6[%c66_66] : memref<81xf32, #tpu.memory_space<smem>>
    %560 = vector.broadcast %559 : f32 to vector<8x128xf32>
    %561 = arith.mulf %375, %560 : vector<8x128xf32>
    %562 = arith.addf %558, %561 : vector<8x128xf32>
    %c75_67 = arith.constant 75 : index
    %563 = memref.load %arg6[%c75_67] : memref<81xf32, #tpu.memory_space<smem>>
    %564 = vector.broadcast %563 : f32 to vector<8x128xf32>
    %565 = arith.mulf %414, %564 : vector<8x128xf32>
    %566 = arith.addf %562, %565 : vector<8x128xf32>
    %c3_68 = arith.constant 3 : index
    %567 = memref.load %arg7[%c3_68] : memref<9xf32, #tpu.memory_space<smem>>
    %568 = vector.broadcast %567 : f32 to vector<8x128xf32>
    %569 = arith.addf %566, %568 : vector<8x128xf32>
    %570 = math.tanh %569 : vector<8x128xf32>
    %c4_69 = arith.constant 4 : index
    %571 = memref.load %arg6[%c4_69] : memref<81xf32, #tpu.memory_space<smem>>
    %572 = vector.broadcast %571 : f32 to vector<8x128xf32>
    %573 = arith.mulf %102, %572 : vector<8x128xf32>
    %c13_70 = arith.constant 13 : index
    %574 = memref.load %arg6[%c13_70] : memref<81xf32, #tpu.memory_space<smem>>
    %575 = vector.broadcast %574 : f32 to vector<8x128xf32>
    %576 = arith.mulf %141, %575 : vector<8x128xf32>
    %577 = arith.addf %573, %576 : vector<8x128xf32>
    %c22_71 = arith.constant 22 : index
    %578 = memref.load %arg6[%c22_71] : memref<81xf32, #tpu.memory_space<smem>>
    %579 = vector.broadcast %578 : f32 to vector<8x128xf32>
    %580 = arith.mulf %180, %579 : vector<8x128xf32>
    %581 = arith.addf %577, %580 : vector<8x128xf32>
    %c31_72 = arith.constant 31 : index
    %582 = memref.load %arg6[%c31_72] : memref<81xf32, #tpu.memory_space<smem>>
    %583 = vector.broadcast %582 : f32 to vector<8x128xf32>
    %584 = arith.mulf %219, %583 : vector<8x128xf32>
    %585 = arith.addf %581, %584 : vector<8x128xf32>
    %c40_73 = arith.constant 40 : index
    %586 = memref.load %arg6[%c40_73] : memref<81xf32, #tpu.memory_space<smem>>
    %587 = vector.broadcast %586 : f32 to vector<8x128xf32>
    %588 = arith.mulf %258, %587 : vector<8x128xf32>
    %589 = arith.addf %585, %588 : vector<8x128xf32>
    %c49_74 = arith.constant 49 : index
    %590 = memref.load %arg6[%c49_74] : memref<81xf32, #tpu.memory_space<smem>>
    %591 = vector.broadcast %590 : f32 to vector<8x128xf32>
    %592 = arith.mulf %297, %591 : vector<8x128xf32>
    %593 = arith.addf %589, %592 : vector<8x128xf32>
    %c58_75 = arith.constant 58 : index
    %594 = memref.load %arg6[%c58_75] : memref<81xf32, #tpu.memory_space<smem>>
    %595 = vector.broadcast %594 : f32 to vector<8x128xf32>
    %596 = arith.mulf %336, %595 : vector<8x128xf32>
    %597 = arith.addf %593, %596 : vector<8x128xf32>
    %c67_76 = arith.constant 67 : index
    %598 = memref.load %arg6[%c67_76] : memref<81xf32, #tpu.memory_space<smem>>
    %599 = vector.broadcast %598 : f32 to vector<8x128xf32>
    %600 = arith.mulf %375, %599 : vector<8x128xf32>
    %601 = arith.addf %597, %600 : vector<8x128xf32>
    %c76_77 = arith.constant 76 : index
    %602 = memref.load %arg6[%c76_77] : memref<81xf32, #tpu.memory_space<smem>>
    %603 = vector.broadcast %602 : f32 to vector<8x128xf32>
    %604 = arith.mulf %414, %603 : vector<8x128xf32>
    %605 = arith.addf %601, %604 : vector<8x128xf32>
    %c4_78 = arith.constant 4 : index
    %606 = memref.load %arg7[%c4_78] : memref<9xf32, #tpu.memory_space<smem>>
    %607 = vector.broadcast %606 : f32 to vector<8x128xf32>
    %608 = arith.addf %605, %607 : vector<8x128xf32>
    %609 = math.tanh %608 : vector<8x128xf32>
    %c5_79 = arith.constant 5 : index
    %610 = memref.load %arg6[%c5_79] : memref<81xf32, #tpu.memory_space<smem>>
    %611 = vector.broadcast %610 : f32 to vector<8x128xf32>
    %612 = arith.mulf %102, %611 : vector<8x128xf32>
    %c14_80 = arith.constant 14 : index
    %613 = memref.load %arg6[%c14_80] : memref<81xf32, #tpu.memory_space<smem>>
    %614 = vector.broadcast %613 : f32 to vector<8x128xf32>
    %615 = arith.mulf %141, %614 : vector<8x128xf32>
    %616 = arith.addf %612, %615 : vector<8x128xf32>
    %c23_81 = arith.constant 23 : index
    %617 = memref.load %arg6[%c23_81] : memref<81xf32, #tpu.memory_space<smem>>
    %618 = vector.broadcast %617 : f32 to vector<8x128xf32>
    %619 = arith.mulf %180, %618 : vector<8x128xf32>
    %620 = arith.addf %616, %619 : vector<8x128xf32>
    %c32_82 = arith.constant 32 : index
    %621 = memref.load %arg6[%c32_82] : memref<81xf32, #tpu.memory_space<smem>>
    %622 = vector.broadcast %621 : f32 to vector<8x128xf32>
    %623 = arith.mulf %219, %622 : vector<8x128xf32>
    %624 = arith.addf %620, %623 : vector<8x128xf32>
    %c41_83 = arith.constant 41 : index
    %625 = memref.load %arg6[%c41_83] : memref<81xf32, #tpu.memory_space<smem>>
    %626 = vector.broadcast %625 : f32 to vector<8x128xf32>
    %627 = arith.mulf %258, %626 : vector<8x128xf32>
    %628 = arith.addf %624, %627 : vector<8x128xf32>
    %c50_84 = arith.constant 50 : index
    %629 = memref.load %arg6[%c50_84] : memref<81xf32, #tpu.memory_space<smem>>
    %630 = vector.broadcast %629 : f32 to vector<8x128xf32>
    %631 = arith.mulf %297, %630 : vector<8x128xf32>
    %632 = arith.addf %628, %631 : vector<8x128xf32>
    %c59_85 = arith.constant 59 : index
    %633 = memref.load %arg6[%c59_85] : memref<81xf32, #tpu.memory_space<smem>>
    %634 = vector.broadcast %633 : f32 to vector<8x128xf32>
    %635 = arith.mulf %336, %634 : vector<8x128xf32>
    %636 = arith.addf %632, %635 : vector<8x128xf32>
    %c68_86 = arith.constant 68 : index
    %637 = memref.load %arg6[%c68_86] : memref<81xf32, #tpu.memory_space<smem>>
    %638 = vector.broadcast %637 : f32 to vector<8x128xf32>
    %639 = arith.mulf %375, %638 : vector<8x128xf32>
    %640 = arith.addf %636, %639 : vector<8x128xf32>
    %c77_87 = arith.constant 77 : index
    %641 = memref.load %arg6[%c77_87] : memref<81xf32, #tpu.memory_space<smem>>
    %642 = vector.broadcast %641 : f32 to vector<8x128xf32>
    %643 = arith.mulf %414, %642 : vector<8x128xf32>
    %644 = arith.addf %640, %643 : vector<8x128xf32>
    %c5_88 = arith.constant 5 : index
    %645 = memref.load %arg7[%c5_88] : memref<9xf32, #tpu.memory_space<smem>>
    %646 = vector.broadcast %645 : f32 to vector<8x128xf32>
    %647 = arith.addf %644, %646 : vector<8x128xf32>
    %648 = math.tanh %647 : vector<8x128xf32>
    %c6_89 = arith.constant 6 : index
    %649 = memref.load %arg6[%c6_89] : memref<81xf32, #tpu.memory_space<smem>>
    %650 = vector.broadcast %649 : f32 to vector<8x128xf32>
    %651 = arith.mulf %102, %650 : vector<8x128xf32>
    %c15_90 = arith.constant 15 : index
    %652 = memref.load %arg6[%c15_90] : memref<81xf32, #tpu.memory_space<smem>>
    %653 = vector.broadcast %652 : f32 to vector<8x128xf32>
    %654 = arith.mulf %141, %653 : vector<8x128xf32>
    %655 = arith.addf %651, %654 : vector<8x128xf32>
    %c24_91 = arith.constant 24 : index
    %656 = memref.load %arg6[%c24_91] : memref<81xf32, #tpu.memory_space<smem>>
    %657 = vector.broadcast %656 : f32 to vector<8x128xf32>
    %658 = arith.mulf %180, %657 : vector<8x128xf32>
    %659 = arith.addf %655, %658 : vector<8x128xf32>
    %c33_92 = arith.constant 33 : index
    %660 = memref.load %arg6[%c33_92] : memref<81xf32, #tpu.memory_space<smem>>
    %661 = vector.broadcast %660 : f32 to vector<8x128xf32>
    %662 = arith.mulf %219, %661 : vector<8x128xf32>
    %663 = arith.addf %659, %662 : vector<8x128xf32>
    %c42_93 = arith.constant 42 : index
    %664 = memref.load %arg6[%c42_93] : memref<81xf32, #tpu.memory_space<smem>>
    %665 = vector.broadcast %664 : f32 to vector<8x128xf32>
    %666 = arith.mulf %258, %665 : vector<8x128xf32>
    %667 = arith.addf %663, %666 : vector<8x128xf32>
    %c51_94 = arith.constant 51 : index
    %668 = memref.load %arg6[%c51_94] : memref<81xf32, #tpu.memory_space<smem>>
    %669 = vector.broadcast %668 : f32 to vector<8x128xf32>
    %670 = arith.mulf %297, %669 : vector<8x128xf32>
    %671 = arith.addf %667, %670 : vector<8x128xf32>
    %c60_95 = arith.constant 60 : index
    %672 = memref.load %arg6[%c60_95] : memref<81xf32, #tpu.memory_space<smem>>
    %673 = vector.broadcast %672 : f32 to vector<8x128xf32>
    %674 = arith.mulf %336, %673 : vector<8x128xf32>
    %675 = arith.addf %671, %674 : vector<8x128xf32>
    %c69_96 = arith.constant 69 : index
    %676 = memref.load %arg6[%c69_96] : memref<81xf32, #tpu.memory_space<smem>>
    %677 = vector.broadcast %676 : f32 to vector<8x128xf32>
    %678 = arith.mulf %375, %677 : vector<8x128xf32>
    %679 = arith.addf %675, %678 : vector<8x128xf32>
    %c78_97 = arith.constant 78 : index
    %680 = memref.load %arg6[%c78_97] : memref<81xf32, #tpu.memory_space<smem>>
    %681 = vector.broadcast %680 : f32 to vector<8x128xf32>
    %682 = arith.mulf %414, %681 : vector<8x128xf32>
    %683 = arith.addf %679, %682 : vector<8x128xf32>
    %c6_98 = arith.constant 6 : index
    %684 = memref.load %arg7[%c6_98] : memref<9xf32, #tpu.memory_space<smem>>
    %685 = vector.broadcast %684 : f32 to vector<8x128xf32>
    %686 = arith.addf %683, %685 : vector<8x128xf32>
    %687 = math.tanh %686 : vector<8x128xf32>
    %c7_99 = arith.constant 7 : index
    %688 = memref.load %arg6[%c7_99] : memref<81xf32, #tpu.memory_space<smem>>
    %689 = vector.broadcast %688 : f32 to vector<8x128xf32>
    %690 = arith.mulf %102, %689 : vector<8x128xf32>
    %c16_100 = arith.constant 16 : index
    %691 = memref.load %arg6[%c16_100] : memref<81xf32, #tpu.memory_space<smem>>
    %692 = vector.broadcast %691 : f32 to vector<8x128xf32>
    %693 = arith.mulf %141, %692 : vector<8x128xf32>
    %694 = arith.addf %690, %693 : vector<8x128xf32>
    %c25_101 = arith.constant 25 : index
    %695 = memref.load %arg6[%c25_101] : memref<81xf32, #tpu.memory_space<smem>>
    %696 = vector.broadcast %695 : f32 to vector<8x128xf32>
    %697 = arith.mulf %180, %696 : vector<8x128xf32>
    %698 = arith.addf %694, %697 : vector<8x128xf32>
    %c34_102 = arith.constant 34 : index
    %699 = memref.load %arg6[%c34_102] : memref<81xf32, #tpu.memory_space<smem>>
    %700 = vector.broadcast %699 : f32 to vector<8x128xf32>
    %701 = arith.mulf %219, %700 : vector<8x128xf32>
    %702 = arith.addf %698, %701 : vector<8x128xf32>
    %c43_103 = arith.constant 43 : index
    %703 = memref.load %arg6[%c43_103] : memref<81xf32, #tpu.memory_space<smem>>
    %704 = vector.broadcast %703 : f32 to vector<8x128xf32>
    %705 = arith.mulf %258, %704 : vector<8x128xf32>
    %706 = arith.addf %702, %705 : vector<8x128xf32>
    %c52_104 = arith.constant 52 : index
    %707 = memref.load %arg6[%c52_104] : memref<81xf32, #tpu.memory_space<smem>>
    %708 = vector.broadcast %707 : f32 to vector<8x128xf32>
    %709 = arith.mulf %297, %708 : vector<8x128xf32>
    %710 = arith.addf %706, %709 : vector<8x128xf32>
    %c61_105 = arith.constant 61 : index
    %711 = memref.load %arg6[%c61_105] : memref<81xf32, #tpu.memory_space<smem>>
    %712 = vector.broadcast %711 : f32 to vector<8x128xf32>
    %713 = arith.mulf %336, %712 : vector<8x128xf32>
    %714 = arith.addf %710, %713 : vector<8x128xf32>
    %c70_106 = arith.constant 70 : index
    %715 = memref.load %arg6[%c70_106] : memref<81xf32, #tpu.memory_space<smem>>
    %716 = vector.broadcast %715 : f32 to vector<8x128xf32>
    %717 = arith.mulf %375, %716 : vector<8x128xf32>
    %718 = arith.addf %714, %717 : vector<8x128xf32>
    %c79_107 = arith.constant 79 : index
    %719 = memref.load %arg6[%c79_107] : memref<81xf32, #tpu.memory_space<smem>>
    %720 = vector.broadcast %719 : f32 to vector<8x128xf32>
    %721 = arith.mulf %414, %720 : vector<8x128xf32>
    %722 = arith.addf %718, %721 : vector<8x128xf32>
    %c7_108 = arith.constant 7 : index
    %723 = memref.load %arg7[%c7_108] : memref<9xf32, #tpu.memory_space<smem>>
    %724 = vector.broadcast %723 : f32 to vector<8x128xf32>
    %725 = arith.addf %722, %724 : vector<8x128xf32>
    %726 = math.tanh %725 : vector<8x128xf32>
    %c8_109 = arith.constant 8 : index
    %727 = memref.load %arg6[%c8_109] : memref<81xf32, #tpu.memory_space<smem>>
    %728 = vector.broadcast %727 : f32 to vector<8x128xf32>
    %729 = arith.mulf %102, %728 : vector<8x128xf32>
    %c17_110 = arith.constant 17 : index
    %730 = memref.load %arg6[%c17_110] : memref<81xf32, #tpu.memory_space<smem>>
    %731 = vector.broadcast %730 : f32 to vector<8x128xf32>
    %732 = arith.mulf %141, %731 : vector<8x128xf32>
    %733 = arith.addf %729, %732 : vector<8x128xf32>
    %c26_111 = arith.constant 26 : index
    %734 = memref.load %arg6[%c26_111] : memref<81xf32, #tpu.memory_space<smem>>
    %735 = vector.broadcast %734 : f32 to vector<8x128xf32>
    %736 = arith.mulf %180, %735 : vector<8x128xf32>
    %737 = arith.addf %733, %736 : vector<8x128xf32>
    %c35_112 = arith.constant 35 : index
    %738 = memref.load %arg6[%c35_112] : memref<81xf32, #tpu.memory_space<smem>>
    %739 = vector.broadcast %738 : f32 to vector<8x128xf32>
    %740 = arith.mulf %219, %739 : vector<8x128xf32>
    %741 = arith.addf %737, %740 : vector<8x128xf32>
    %c44_113 = arith.constant 44 : index
    %742 = memref.load %arg6[%c44_113] : memref<81xf32, #tpu.memory_space<smem>>
    %743 = vector.broadcast %742 : f32 to vector<8x128xf32>
    %744 = arith.mulf %258, %743 : vector<8x128xf32>
    %745 = arith.addf %741, %744 : vector<8x128xf32>
    %c53_114 = arith.constant 53 : index
    %746 = memref.load %arg6[%c53_114] : memref<81xf32, #tpu.memory_space<smem>>
    %747 = vector.broadcast %746 : f32 to vector<8x128xf32>
    %748 = arith.mulf %297, %747 : vector<8x128xf32>
    %749 = arith.addf %745, %748 : vector<8x128xf32>
    %c62_115 = arith.constant 62 : index
    %750 = memref.load %arg6[%c62_115] : memref<81xf32, #tpu.memory_space<smem>>
    %751 = vector.broadcast %750 : f32 to vector<8x128xf32>
    %752 = arith.mulf %336, %751 : vector<8x128xf32>
    %753 = arith.addf %749, %752 : vector<8x128xf32>
    %c71_116 = arith.constant 71 : index
    %754 = memref.load %arg6[%c71_116] : memref<81xf32, #tpu.memory_space<smem>>
    %755 = vector.broadcast %754 : f32 to vector<8x128xf32>
    %756 = arith.mulf %375, %755 : vector<8x128xf32>
    %757 = arith.addf %753, %756 : vector<8x128xf32>
    %c80_117 = arith.constant 80 : index
    %758 = memref.load %arg6[%c80_117] : memref<81xf32, #tpu.memory_space<smem>>
    %759 = vector.broadcast %758 : f32 to vector<8x128xf32>
    %760 = arith.mulf %414, %759 : vector<8x128xf32>
    %761 = arith.addf %757, %760 : vector<8x128xf32>
    %c8_118 = arith.constant 8 : index
    %762 = memref.load %arg7[%c8_118] : memref<9xf32, #tpu.memory_space<smem>>
    %763 = vector.broadcast %762 : f32 to vector<8x128xf32>
    %764 = arith.addf %761, %763 : vector<8x128xf32>
    %765 = math.tanh %764 : vector<8x128xf32>
    %c0_119 = arith.constant 0 : index
    %766 = memref.load %arg8[%c0_119] : memref<9xf32, #tpu.memory_space<smem>>
    %767 = vector.broadcast %766 : f32 to vector<8x128xf32>
    %768 = arith.mulf %453, %767 : vector<8x128xf32>
    %c1_120 = arith.constant 1 : index
    %769 = memref.load %arg8[%c1_120] : memref<9xf32, #tpu.memory_space<smem>>
    %770 = vector.broadcast %769 : f32 to vector<8x128xf32>
    %771 = arith.mulf %492, %770 : vector<8x128xf32>
    %772 = arith.addf %768, %771 : vector<8x128xf32>
    %c2_121 = arith.constant 2 : index
    %773 = memref.load %arg8[%c2_121] : memref<9xf32, #tpu.memory_space<smem>>
    %774 = vector.broadcast %773 : f32 to vector<8x128xf32>
    %775 = arith.mulf %531, %774 : vector<8x128xf32>
    %776 = arith.addf %772, %775 : vector<8x128xf32>
    %c3_122 = arith.constant 3 : index
    %777 = memref.load %arg8[%c3_122] : memref<9xf32, #tpu.memory_space<smem>>
    %778 = vector.broadcast %777 : f32 to vector<8x128xf32>
    %779 = arith.mulf %570, %778 : vector<8x128xf32>
    %780 = arith.addf %776, %779 : vector<8x128xf32>
    %c4_123 = arith.constant 4 : index
    %781 = memref.load %arg8[%c4_123] : memref<9xf32, #tpu.memory_space<smem>>
    %782 = vector.broadcast %781 : f32 to vector<8x128xf32>
    %783 = arith.mulf %609, %782 : vector<8x128xf32>
    %784 = arith.addf %780, %783 : vector<8x128xf32>
    %c5_124 = arith.constant 5 : index
    %785 = memref.load %arg8[%c5_124] : memref<9xf32, #tpu.memory_space<smem>>
    %786 = vector.broadcast %785 : f32 to vector<8x128xf32>
    %787 = arith.mulf %648, %786 : vector<8x128xf32>
    %788 = arith.addf %784, %787 : vector<8x128xf32>
    %c6_125 = arith.constant 6 : index
    %789 = memref.load %arg8[%c6_125] : memref<9xf32, #tpu.memory_space<smem>>
    %790 = vector.broadcast %789 : f32 to vector<8x128xf32>
    %791 = arith.mulf %687, %790 : vector<8x128xf32>
    %792 = arith.addf %788, %791 : vector<8x128xf32>
    %c7_126 = arith.constant 7 : index
    %793 = memref.load %arg8[%c7_126] : memref<9xf32, #tpu.memory_space<smem>>
    %794 = vector.broadcast %793 : f32 to vector<8x128xf32>
    %795 = arith.mulf %726, %794 : vector<8x128xf32>
    %796 = arith.addf %792, %795 : vector<8x128xf32>
    %c8_127 = arith.constant 8 : index
    %797 = memref.load %arg8[%c8_127] : memref<9xf32, #tpu.memory_space<smem>>
    %798 = vector.broadcast %797 : f32 to vector<8x128xf32>
    %799 = arith.mulf %765, %798 : vector<8x128xf32>
    %800 = arith.addf %796, %799 : vector<8x128xf32>
    %c0_128 = arith.constant 0 : index
    %801 = memref.load %arg9[%c0_128] : memref<1xf32, #tpu.memory_space<smem>>
    %802 = vector.broadcast %801 : f32 to vector<8x128xf32>
    %803 = arith.addf %800, %802 : vector<8x128xf32>
    %c0_129 = arith.constant 0 : index
    %c0_130 = arith.constant 0 : index
    %804 = vector.load %arg10[%c0_129, %c0_130] : memref<8x128xf32, #tpu.memory_space<vmem>>, vector<8x128xf32>
    tpu.vector_store %arg10[%c0_129, %c0_130], %803 {strides = array<i32>} : memref<8x128xf32, #tpu.memory_space<vmem>>, vector<8x128xf32>,
    return
  }
  func.func @transform_0(%arg0: i32) -> (i32, i32) {
    %c0_i32 = arith.constant 0 : i32
    %c0_i32_0 = arith.constant 0 : i32
    return %arg0, %c0_i32 : i32, i32
  }
  func.func @transform_1(%arg0: i32) -> i32 {
    %c0_i32 = arith.constant 0 : i32
    %c0_i32_0 = arith.constant 0 : i32
    return %c0_i32 : i32
  }
  func.func @transform_2(%arg0: i32) -> i32 {
    %c0_i32 = arith.constant 0 : i32
    %c0_i32_0 = arith.constant 0 : i32
    return %c0_i32 : i32
  }
  func.func @transform_3(%arg0: i32) -> i32 {
    %c0_i32 = arith.constant 0 : i32
    %c0_i32_0 = arith.constant 0 : i32
    return %c0_i32 : i32
  }
  func.func @transform_4(%arg0: i32) -> i32 {
    %c0_i32 = arith.constant 0 : i32
    %c0_i32_0 = arith.constant 0 : i32
    return %c0_i32 : i32
  }
  func.func @transform_5(%arg0: i32) -> i32 {
    %c0_i32 = arith.constant 0 : i32
    %c0_i32_0 = arith.constant 0 : i32
    return %c0_i32 : i32
  }
  func.func @transform_6(%arg0: i32) -> i32 {
    %c0_i32 = arith.constant 0 : i32
    %c0_i32_0 = arith.constant 0 : i32
    return %c0_i32 : i32
  }
  func.func @transform_7(%arg0: i32) -> i32 {
    %c0_i32 = arith.constant 0 : i32
    %c0_i32_0 = arith.constant 0 : i32
    return %c0_i32 : i32
  }
  func.func @transform_8(%arg0: i32) -> i32 {
    %c0_i32 = arith.constant 0 : i32
    %c0_i32_0 = arith.constant 0 : i32
    return %c0_i32 : i32
  }
  func.func @transform_9(%arg0: i32) -> (i32, i32) {
    %c0_i32 = arith.constant 0 : i32
    %c0_i32_0 = arith.constant 0 : i32
    return %arg0, %c0_i32 : i32, i32
  }
}

</mosaic_0001>

<llo_original>
// kernel: damped_oscillator_forward.1
$region0: #{damped_oscillator_forward.1}
  #allocation0 [shape = 'u32[]', space=smem, size = 0x4, offset = 0x4, fixed_abs, tag = 'smem constant byte address 0x4 - core index']
  #allocation1 [shape = 'u32[144,128]{1,0:T(1,128)}', space=vmem, size = 0x12000, scoped, tag = 'internal scratch']
  #allocation2 [shape = 'f32[1]{0:T(128)S(6)}', space=smem, size = 0x200, scoped, tag = 'scoped memory for damped_oscillator_forward.1']
  %s0 = inlined_call_operand.vmem [shape: f32[8,128], index: 0, kind: input, shape index: {}]
  %s1 = inlined_call_operand.vmem [shape: f32[9], index: 1, kind: input, shape index: {}]
  %s2 = inlined_call_operand.vmem [shape: f32[9], index: 2, kind: input, shape index: {}]
  %s3 = inlined_call_operand.vmem [shape: f32[81], index: 3, kind: input, shape index: {}]
  %s4 = inlined_call_operand.vmem [shape: f32[9], index: 4, kind: input, shape index: {}]
  %s5 = inlined_call_operand.vmem [shape: f32[81], index: 5, kind: input, shape index: {}]
  %s6 = inlined_call_operand.vmem [shape: f32[9], index: 6, kind: input, shape index: {}]
  %s7 = inlined_call_operand.vmem [shape: f32[9], index: 7, kind: input, shape index: {}]
  %s8 = inlined_call_operand.<no memory space> [shape: f32[1], index: 8, kind: input, shape index: {}]
  %s9 = inlined_call_operand.vmem [shape: f32[8,128], index: 9, kind: output, shape index: {}]
  %s10 = sld [smem:[#allocation0]]
  $region74: #{damped_oscillator_forward.1} parent=0
    _
  %s12 = ssub.s32 1, %s10
  %s13 = scalar_select 0, %s12, %s10
  %14 = sst [smem:[#allocation2]] %s8
  $region1: #{damped_oscillator_forward.1} parent=0
    #allocation3 [shape = 'u8[512]{0}', space=smem, size = 0x200, scoped, tag = 'input window, operand 1, single buffered']
    #allocation4 [shape = 's32[1]{0}', space=sflag, size = 0x4, scoped, tag = 'scoped memory for damped_oscillator_forward.1']
    #allocation5 [shape = 'u8[512]{0}', space=smem, size = 0x200, scoped, tag = 'input window, operand 2, single buffered']
    #allocation6 [shape = 's32[1]{0}', space=sflag, size = 0x4, scoped, tag = 'scoped memory for damped_oscillator_forward.1']
    #allocation7 [shape = 'u8[512]{0}', space=smem, size = 0x200, scoped, tag = 'input window, operand 3, single buffered']
    #allocation8 [shape = 'u8[512]{0}', space=smem, size = 0x200, scoped, tag = 'input window, operand 4, single buffered']
    #allocation9 [shape = 's32[1]{0}', space=sflag, size = 0x4, scoped, tag = 'scoped memory for damped_oscillator_forward.1']
    #allocation10 [shape = 'u8[512]{0}', space=smem, size = 0x200, scoped, tag = 'input window, operand 5, single buffered']
    #allocation11 [shape = 'u8[512]{0}', space=smem, size = 0x200, scoped, tag = 'input window, operand 6, single buffered']
    #allocation12 [shape = 's32[1]{0}', space=sflag, size = 0x4, scoped, tag = 'scoped memory for damped_oscillator_forward.1']
    #allocation13 [shape = 'u8[512]{0}', space=smem, size = 0x200, scoped, tag = 'input window, operand 7, single buffered']
    %15 = vsyncpa [#allocation4], 0
    %16 = vsyncpa [#allocation6], 0
    %17 = vsyncpa [#allocation9], 0
    %18 = vsyncpa [#allocation12], 0
    // Predicated region
    $region2: #{damped_oscillator_forward.1} parent=1 // pred_check
      _
    $region3: #{damped_oscillator_forward.1} parent=1 // pred_check_branch
      %20 = sbr.rel (0) target = $region5
    $region4: #{damped_oscillator_forward.1} parent=1 // pred_region
      _
    $region5: #{damped_oscillator_forward.1} parent=1 // pred_fallthru
      _
    // Predicated region
    $region6: #{damped_oscillator_forward.1} parent=1 // pred_check
      _
    $region7: #{damped_oscillator_forward.1} parent=1 // pred_check_branch
      %22 = sbr.rel (0) target = $region9
    $region8: #{damped_oscillator_forward.1} parent=1 // pred_region
      %s24 = ssub.s32 16, 16
      %25 = vsyncadd [#allocation4], %s24
      %s27 = sshll.u32 %s1, 4
      %s28 = int_to_ptr.vmem [resolvable:$true] %s27
      %30 = dma.vmem_to_smem %s28, 16, [#allocation3], [#allocation4]
    $region9: #{damped_oscillator_forward.1} parent=1 // pred_fallthru
      _
    // Predicated region
    $region10: #{damped_oscillator_forward.1} parent=1 // pred_check
      _
    $region11: #{damped_oscillator_forward.1} parent=1 // pred_check_branch
      %32 = sbr.rel (0) target = $region13
    $region12: #{damped_oscillator_forward.1} parent=1 // pred_region
      %s34 = ssub.s32 16, 16
      %35 = vsyncadd [#allocation6], %s34
      %s37 = sshll.u32 %s2, 4
      %s38 = int_to_ptr.vmem [resolvable:$true] %s37
      %40 = dma.vmem_to_smem %s38, 16, [#allocation5], [#allocation6]
    $region13: #{damped_oscillator_forward.1} parent=1 // pred_fallthru
      _
    // Predicated region
    $region14: #{damped_oscillator_forward.1} parent=1 // pred_check
      _
    $region15: #{damped_oscillator_forward.1} parent=1 // pred_check_branch
      %42 = sbr.rel (0) target = $region17
    $region16: #{damped_oscillator_forward.1} parent=1 // pred_region
      %s44 = ssub.s32 16, 16
      %45 = vsyncadd [#allocation6], %s44
      %s47 = sshll.u32 %s3, 4
      %s48 = int_to_ptr.vmem [resolvable:$true] %s47
      %50 = dma.vmem_to_smem %s48, 16, [#allocation7], [#allocation6]
    $region17: #{damped_oscillator_forward.1} parent=1 // pred_fallthru
      _
    // Predicated region
    $region18: #{damped_oscillator_forward.1} parent=1 // pred_check
      _
    $region19: #{damped_oscillator_forward.1} parent=1 // pred_check_branch
      %52 = sbr.rel (0) target = $region21
    $region20: #{damped_oscillator_forward.1} parent=1 // pred_region
      %s54 = ssub.s32 16, 16
      %55 = vsyncadd [#allocation9], %s54
      %s57 = sshll.u32 %s4, 4
      %s58 = int_to_ptr.vmem [resolvable:$true] %s57
      %60 = dma.vmem_to_smem %s58, 16, [#allocation8], [#allocation9]
    $region21: #{damped_oscillator_forward.1} parent=1 // pred_fallthru
      _
    // Predicated region
    $region22: #{damped_oscillator_forward.1} parent=1 // pred_check
      _
    $region23: #{damped_oscillator_forward.1} parent=1 // pred_check_branch
      %62 = sbr.rel (0) target = $region25
    $region24: #{damped_oscillator_forward.1} parent=1 // pred_region
      %s64 = ssub.s32 16, 16
      %65 = vsyncadd [#allocation9], %s64
      %s67 = sshll.u32 %s5, 4
      %s68 = int_to_ptr.vmem [resolvable:$true] %s67
      %70 = dma.vmem_to_smem %s68, 16, [#allocation10], [#allocation9]
    $region25: #{damped_oscillator_forward.1} parent=1 // pred_fallthru
      _
    // Predicated region
    $region26: #{damped_oscillator_forward.1} parent=1 // pred_check
      _
    $region27: #{damped_oscillator_forward.1} parent=1 // pred_check_branch
      %72 = sbr.rel (0) target = $region29
    $region28: #{damped_oscillator_forward.1} parent=1 // pred_region
      %s74 = ssub.s32 16, 16
      %75 = vsyncadd [#allocation12], %s74
      %s77 = sshll.u32 %s6, 4
      %s78 = int_to_ptr.vmem [resolvable:$true] %s77
      %80 = dma.vmem_to_smem %s78, 16, [#allocation11], [#allocation12]
    $region29: #{damped_oscillator_forward.1} parent=1 // pred_fallthru
      _
    // Predicated region
    $region30: #{damped_oscillator_forward.1} parent=1 // pred_check
      _
    $region31: #{damped_oscillator_forward.1} parent=1 // pred_check_branch
      %82 = sbr.rel (0) target = $region33
    $region32: #{damped_oscillator_forward.1} parent=1 // pred_region
      %s84 = ssub.s32 16, 16
      %85 = vsyncadd [#allocation12], %s84
      %s87 = sshll.u32 %s7, 4
      %s88 = int_to_ptr.vmem [resolvable:$true] %s87
      %90 = dma.vmem_to_smem %s88, 16, [#allocation13], [#allocation12]
    $region33: #{damped_oscillator_forward.1} parent=1 // pred_fallthru
      _
    // Predicated region
    $region34: #{damped_oscillator_forward.1} parent=1 // pred_check
      _
    $region35: #{damped_oscillator_forward.1} parent=1 // pred_check_branch
      %92 = sbr.rel (0) target = $region37
    $region36: #{damped_oscillator_forward.1} parent=1 // pred_region
      _
    $region37: #{damped_oscillator_forward.1} parent=1 // pred_fallthru
      _
    // Predicated region
    $region38: #{damped_oscillator_forward.1} parent=1 // pred_check
      _
    $region39: #{damped_oscillator_forward.1} parent=1 // pred_check_branch
      %94 = sbr.rel (0) target = $region41
    $region40: #{damped_oscillator_forward.1} parent=1 // pred_region
      %95 = dma.done [#allocation4], 16
    $region41: #{damped_oscillator_forward.1} parent=1 // pred_fallthru
      _
    // Predicated region
    $region42: #{damped_oscillator_forward.1} parent=1 // pred_check
      _
    $region43: #{damped_oscillator_forward.1} parent=1 // pred_check_branch
      %97 = sbr.rel (0) target = $region45
    $region44: #{damped_oscillator_forward.1} parent=1 // pred_region
      %98 = dma.done [#allocation6], 16
    $region45: #{damped_oscillator_forward.1} parent=1 // pred_fallthru
      _
    // Predicated region
    $region46: #{damped_oscillator_forward.1} parent=1 // pred_check
      _
    $region47: #{damped_oscillator_forward.1} parent=1 // pred_check_branch
      %100 = sbr.rel (0) target = $region49
    $region48: #{damped_oscillator_forward.1} parent=1 // pred_region
      %101 = dma.done [#allocation6], 16
    $region49: #{damped_oscillator_forward.1} parent=1 // pred_fallthru
      _
    // Predicated region
    $region50: #{damped_oscillator_forward.1} parent=1 // pred_check
      _
    $region51: #{damped_oscillator_forward.1} parent=1 // pred_check_branch
      %103 = sbr.rel (0) target = $region53
    $region52: #{damped_oscillator_forward.1} parent=1 // pred_region
      %104 = dma.done [#allocation9], 16
    $region53: #{damped_oscillator_forward.1} parent=1 // pred_fallthru
      _
    // Predicated region
    $region54: #{damped_oscillator_forward.1} parent=1 // pred_check
      _
    $region55: #{damped_oscillator_forward.1} parent=1 // pred_check_branch
      %106 = sbr.rel (0) target = $region57
    $region56: #{damped_oscillator_forward.1} parent=1 // pred_region
      %107 = dma.done [#allocation9], 16
    $region57: #{damped_oscillator_forward.1} parent=1 // pred_fallthru
      _
    // Predicated region
    $region58: #{damped_oscillator_forward.1} parent=1 // pred_check
      _
    $region59: #{damped_oscillator_forward.1} parent=1 // pred_check_branch
      %109 = sbr.rel (0) target = $region61
    $region60: #{damped_oscillator_forward.1} parent=1 // pred_region
      %110 = dma.done [#allocation12], 16
    $region61: #{damped_oscillator_forward.1} parent=1 // pred_fallthru
      _
    // Predicated region
    $region62: #{damped_oscillator_forward.1} parent=1 // pred_check
      _
    $region63: #{damped_oscillator_forward.1} parent=1 // pred_check_branch
      %112 = sbr.rel (0) target = $region65
    $region64: #{damped_oscillator_forward.1} parent=1 // pred_region
      %113 = dma.done [#allocation12], 16
    $region65: #{damped_oscillator_forward.1} parent=1 // pred_fallthru
      _
    %114 = sfence
    %v115 = vld [vmem:[%s0] sm:$0xff]
    %s116 = sld [smem:[#allocation3]]
    %v117 = vstv %s116
    %v118 = vmul.f32 %v117, %v115
    %s119 = sld [smem:[#allocation5]]
    %v120 = vstv %s119
    %v121 = vadd.f32 %v118, %v120
    %v122 = vtanh.pop %v121
    %s123 = sld [smem:[#allocation3 + $0x1]]
    %v124 = vstv %s123
    %v125 = vmul.f32 %v124, %v115
    %s126 = sld [smem:[#allocation5 + $0x1]]
    %v127 = vstv %s126
    %v128 = vadd.f32 %v125, %v127
    %v129 = vtanh.pop %v128
    %s130 = sld [smem:[#allocation3 + $0x2]]
    %v131 = vstv %s130
    %v132 = vmul.f32 %v131, %v115
    %s133 = sld [smem:[#allocation5 + $0x2]]
    %v134 = vstv %s133
    %v135 = vadd.f32 %v132, %v134
    %v136 = vtanh.pop %v135
    %s137 = sld [smem:[#allocation3 + $0x3]]
    %v138 = vstv %s137
    %v139 = vmul.f32 %v138, %v115
    %s140 = sld [smem:[#allocation5 + $0x3]]
    %v141 = vstv %s140
    %v142 = vadd.f32 %v139, %v141
    %v143 = vtanh.pop %v142
    %s144 = sld [smem:[#allocation3 + $0x4]]
    %v145 = vstv %s144
    %v146 = vmul.f32 %v145, %v115
    %s147 = sld [smem:[#allocation5 + $0x4]]
    %v148 = vstv %s147
    %v149 = vadd.f32 %v146, %v148
    %v150 = vtanh.pop %v149
    %s151 = sld [smem:[#allocation3 + $0x5]]
    %v152 = vstv %s151
    %v153 = vmul.f32 %v152, %v115
    %s154 = sld [smem:[#allocation5 + $0x5]]
    %v155 = vstv %s154
    %v156 = vadd.f32 %v153, %v155
    %v157 = vtanh.pop %v156
    %s158 = sld [smem:[#allocation3 + $0x6]]
    %v159 = vstv %s158
    %v160 = vmul.f32 %v159, %v115
    %s161 = sld [smem:[#allocation5 + $0x6]]
    %v162 = vstv %s161
    %v163 = vadd.f32 %v160, %v162
    %v164 = vtanh.pop %v163
    %s165 = sld [smem:[#allocation3 + $0x7]]
    %v166 = vstv %s165
    %v167 = vmul.f32 %v166, %v115
    %s168 = sld [smem:[#allocation5 + $0x7]]
    %v169 = vstv %s168
    %v170 = vadd.f32 %v167, %v169
    %v171 = vtanh.pop %v170
    %s172 = sld [smem:[#allocation3 + $0x8]]
    %v173 = vstv %s172
    %v174 = vmul.f32 %v173, %v115
    %s175 = sld [smem:[#allocation5 + $0x8]]
    %v176 = vstv %s175
    %v177 = vadd.f32 %v174, %v176
    %v178 = vtanh.pop %v177
    %s179 = sld [smem:[#allocation7]]
    %v180 = vstv %s179
    %v181 = vmul.f32 %v122, %v180
    %s182 = sld [smem:[#allocation7 + $0x9]]
    %v183 = vstv %s182
    %v184 = vmul.f32 %v129, %v183
    %v185 = vadd.f32 %v181, %v184
    %s186 = sld [smem:[#allocation7 + $0x12]]
    %v187 = vstv %s186
    %v188 = vmul.f32 %v136, %v187
    %v189 = vadd.f32 %v185, %v188
    %s190 = sld [smem:[#allocation7 + $0x1b]]
    %v191 = vstv %s190
    %v192 = vmul.f32 %v143, %v191
    %v193 = vadd.f32 %v189, %v192
    %s194 = sld [smem:[#allocation7 + $0x24]]
    %v195 = vstv %s194
    %v196 = vmul.f32 %v150, %v195
    %v197 = vadd.f32 %v193, %v196
    %s198 = sld [smem:[#allocation7 + $0x2d]]
    %v199 = vstv %s198
    %v200 = vmul.f32 %v157, %v199
    %v201 = vadd.f32 %v197, %v200
    %s202 = sld [smem:[#allocation7 + $0x36]]
    %v203 = vstv %s202
    %v204 = vmul.f32 %v164, %v203
    %v205 = vadd.f32 %v201, %v204
    %s206 = sld [smem:[#allocation7 + $0x3f]]
    %v207 = vstv %s206
    %v208 = vmul.f32 %v171, %v207
    %v209 = vadd.f32 %v205, %v208
    %s210 = sld [smem:[#allocation7 + $0x48]]
    %v211 = vstv %s210
    %v212 = vmul.f32 %v178, %v211
    %v213 = vadd.f32 %v209, %v212
    %s214 = sld [smem:[#allocation8]]
    %v215 = vstv %s214
    %v216 = vadd.f32 %v213, %v215
    %v217 = vtanh.pop %v216
    %s218 = sld [smem:[#allocation7 + $0x1]]
    %v219 = vstv %s218
    %v220 = vmul.f32 %v122, %v219
    %s221 = sld [smem:[#allocation7 + $0xa]]
    %v222 = vstv %s221
    %v223 = vmul.f32 %v129, %v222
    %v224 = vadd.f32 %v220, %v223
    %s225 = sld [smem:[#allocation7 + $0x13]]
    %v226 = vstv %s225
    %v227 = vmul.f32 %v136, %v226
    %v228 = vadd.f32 %v224, %v227
    %s229 = sld [smem:[#allocation7 + $0x1c]]
    %v230 = vstv %s229
    %v231 = vmul.f32 %v143, %v230
    %v232 = vadd.f32 %v228, %v231
    %s233 = sld [smem:[#allocation7 + $0x25]]
    %v234 = vstv %s233
    %v235 = vmul.f32 %v150, %v234
    %v236 = vadd.f32 %v232, %v235
    %s237 = sld [smem:[#allocation7 + $0x2e]]
    %v238 = vstv %s237
    %v239 = vmul.f32 %v157, %v238
    %v240 = vadd.f32 %v236, %v239
    %s241 = sld [smem:[#allocation7 + $0x37]]
    %v242 = vstv %s241
    %v243 = vmul.f32 %v164, %v242
    %v244 = vadd.f32 %v240, %v243
    %s245 = sld [smem:[#allocation7 + $0x40]]
    %v246 = vstv %s245
    %v247 = vmul.f32 %v171, %v246
    %v248 = vadd.f32 %v244, %v247
    %s249 = sld [smem:[#allocation7 + $0x49]]
    %v250 = vstv %s249
    %v251 = vmul.f32 %v178, %v250
    %v252 = vadd.f32 %v248, %v251
    %s253 = sld [smem:[#allocation8 + $0x1]]
    %v254 = vstv %s253
    %v255 = vadd.f32 %v252, %v254
    %v256 = vtanh.pop %v255
    %s257 = sld [smem:[#allocation7 + $0x2]]
    %v258 = vstv %s257
    %v259 = vmul.f32 %v122, %v258
    %s260 = sld [smem:[#allocation7 + $0xb]]
    %v261 = vstv %s260
    %v262 = vmul.f32 %v129, %v261
    %v263 = vadd.f32 %v259, %v262
    %s264 = sld [smem:[#allocation7 + $0x14]]
    %v265 = vstv %s264
    %v266 = vmul.f32 %v136, %v265
    %v267 = vadd.f32 %v263, %v266
    %s268 = sld [smem:[#allocation7 + $0x1d]]
    %v269 = vstv %s268
    %v270 = vmul.f32 %v143, %v269
    %v271 = vadd.f32 %v267, %v270
    %s272 = sld [smem:[#allocation7 + $0x26]]
    %v273 = vstv %s272
    %v274 = vmul.f32 %v150, %v273
    %v275 = vadd.f32 %v271, %v274
    %s276 = sld [smem:[#allocation7 + $0x2f]]
    %v277 = vstv %s276
    %v278 = vmul.f32 %v157, %v277
    %v279 = vadd.f32 %v275, %v278
    %s280 = sld [smem:[#allocation7 + $0x38]]
    %v281 = vstv %s280
    %v282 = vmul.f32 %v164, %v281
    %v283 = vadd.f32 %v279, %v282
    %s284 = sld [smem:[#allocation7 + $0x41]]
    %v285 = vstv %s284
    %v286 = vmul.f32 %v171, %v285
    %v287 = vadd.f32 %v283, %v286
    %s288 = sld [smem:[#allocation7 + $0x4a]]
    %v289 = vstv %s288
    %v290 = vmul.f32 %v178, %v289
    %v291 = vadd.f32 %v287, %v290
    %s292 = sld [smem:[#allocation8 + $0x2]]
    %v293 = vstv %s292
    %v294 = vadd.f32 %v291, %v293
    %v295 = vtanh.pop %v294
    %s296 = sld [smem:[#allocation7 + $0x3]]
    %v297 = vstv %s296
    %v298 = vmul.f32 %v122, %v297
    %s299 = sld [smem:[#allocation7 + $0xc]]
    %v300 = vstv %s299
    %v301 = vmul.f32 %v129, %v300
    %v302 = vadd.f32 %v298, %v301
    %s303 = sld [smem:[#allocation7 + $0x15]]
    %v304 = vstv %s303
    %v305 = vmul.f32 %v136, %v304
    %v306 = vadd.f32 %v302, %v305
    %s307 = sld [smem:[#allocation7 + $0x1e]]
    %v308 = vstv %s307
    %v309 = vmul.f32 %v143, %v308
    %v310 = vadd.f32 %v306, %v309
    %s311 = sld [smem:[#allocation7 + $0x27]]
    %v312 = vstv %s311
    %v313 = vmul.f32 %v150, %v312
    %v314 = vadd.f32 %v310, %v313
    %s315 = sld [smem:[#allocation7 + $0x30]]
    %v316 = vstv %s315
    %v317 = vmul.f32 %v157, %v316
    %v318 = vadd.f32 %v314, %v317
    %s319 = sld [smem:[#allocation7 + $0x39]]
    %v320 = vstv %s319
    %v321 = vmul.f32 %v164, %v320
    %v322 = vadd.f32 %v318, %v321
    %s323 = sld [smem:[#allocation7 + $0x42]]
    %v324 = vstv %s323
    %v325 = vmul.f32 %v171, %v324
    %v326 = vadd.f32 %v322, %v325
    %s327 = sld [smem:[#allocation7 + $0x4b]]
    %v328 = vstv %s327
    %v329 = vmul.f32 %v178, %v328
    %v330 = vadd.f32 %v326, %v329
    %s331 = sld [smem:[#allocation8 + $0x3]]
    %v332 = vstv %s331
    %v333 = vadd.f32 %v330, %v332
    %v334 = vtanh.pop %v333
    %s335 = sld [smem:[#allocation7 + $0x4]]
    %v336 = vstv %s335
    %v337 = vmul.f32 %v122, %v336
    %s338 = sld [smem:[#allocation7 + $0xd]]
    %v339 = vstv %s338
    %v340 = vmul.f32 %v129, %v339
    %v341 = vadd.f32 %v337, %v340
    %s342 = sld [smem:[#allocation7 + $0x16]]
    %v343 = vstv %s342
    %v344 = vmul.f32 %v136, %v343
    %v345 = vadd.f32 %v341, %v344
    %s346 = sld [smem:[#allocation7 + $0x1f]]
    %v347 = vstv %s346
    %v348 = vmul.f32 %v143, %v347
    %v349 = vadd.f32 %v345, %v348
    %s350 = sld [smem:[#allocation7 + $0x28]]
    %v351 = vstv %s350
    %v352 = vmul.f32 %v150, %v351
    %v353 = vadd.f32 %v349, %v352
    %s354 = sld [smem:[#allocation7 + $0x31]]
    %v355 = vstv %s354
    %v356 = vmul.f32 %v157, %v355
    %v357 = vadd.f32 %v353, %v356
    %s358 = sld [smem:[#allocation7 + $0x3a]]
    %v359 = vstv %s358
    %v360 = vmul.f32 %v164, %v359
    %v361 = vadd.f32 %v357, %v360
    %s362 = sld [smem:[#allocation7 + $0x43]]
    %v363 = vstv %s362
    %v364 = vmul.f32 %v171, %v363
    %v365 = vadd.f32 %v361, %v364
    %s366 = sld [smem:[#allocation7 + $0x4c]]
    %v367 = vstv %s366
    %v368 = vmul.f32 %v178, %v367
    %v369 = vadd.f32 %v365, %v368
    %s370 = sld [smem:[#allocation8 + $0x4]]
    %v371 = vstv %s370
    %v372 = vadd.f32 %v369, %v371
    %v373 = vtanh.pop %v372
    %s374 = sld [smem:[#allocation7 + $0x5]]
    %v375 = vstv %s374
    %v376 = vmul.f32 %v122, %v375
    %s377 = sld [smem:[#allocation7 + $0xe]]
    %v378 = vstv %s377
    %v379 = vmul.f32 %v129, %v378
    %v380 = vadd.f32 %v376, %v379
    %s381 = sld [smem:[#allocation7 + $0x17]]
    %v382 = vstv %s381
    %v383 = vmul.f32 %v136, %v382
    %v384 = vadd.f32 %v380, %v383
    %s385 = sld [smem:[#allocation7 + $0x20]]
    %v386 = vstv %s385
    %v387 = vmul.f32 %v143, %v386
    %v388 = vadd.f32 %v384, %v387
    %s389 = sld [smem:[#allocation7 + $0x29]]
    %v390 = vstv %s389
    %v391 = vmul.f32 %v150, %v390
    %v392 = vadd.f32 %v388, %v391
    %s393 = sld [smem:[#allocation7 + $0x32]]
    %v394 = vstv %s393
    %v395 = vmul.f32 %v157, %v394
    %v396 = vadd.f32 %v392, %v395
    %s397 = sld [smem:[#allocation7 + $0x3b]]
    %v398 = vstv %s397
    %v399 = vmul.f32 %v164, %v398
    %v400 = vadd.f32 %v396, %v399
    %s401 = sld [smem:[#allocation7 + $0x44]]
    %v402 = vstv %s401
    %v403 = vmul.f32 %v171, %v402
    %v404 = vadd.f32 %v400, %v403
    %s405 = sld [smem:[#allocation7 + $0x4d]]
    %v406 = vstv %s405
    %v407 = vmul.f32 %v178, %v406
    %v408 = vadd.f32 %v404, %v407
    %s409 = sld [smem:[#allocation8 + $0x5]]
    %v410 = vstv %s409
    %v411 = vadd.f32 %v408, %v410
    %v412 = vtanh.pop %v411
    %s413 = sld [smem:[#allocation7 + $0x6]]
    %v414 = vstv %s413
    %v415 = vmul.f32 %v122, %v414
    %s416 = sld [smem:[#allocation7 + $0xf]]
    %v417 = vstv %s416
    %v418 = vmul.f32 %v129, %v417
    %v419 = vadd.f32 %v415, %v418
    %s420 = sld [smem:[#allocation7 + $0x18]]
    %v421 = vstv %s420
    %v422 = vmul.f32 %v136, %v421
    %v423 = vadd.f32 %v419, %v422
    %s424 = sld [smem:[#allocation7 + $0x21]]
    %v425 = vstv %s424
    %v426 = vmul.f32 %v143, %v425
    %v427 = vadd.f32 %v423, %v426
    %s428 = sld [smem:[#allocation7 + $0x2a]]
    %v429 = vstv %s428
    %v430 = vmul.f32 %v150, %v429
    %v431 = vadd.f32 %v427, %v430
    %s432 = sld [smem:[#allocation7 + $0x33]]
    %v433 = vstv %s432
    %v434 = vmul.f32 %v157, %v433
    %v435 = vadd.f32 %v431, %v434
    %s436 = sld [smem:[#allocation7 + $0x3c]]
    %v437 = vstv %s436
    %v438 = vmul.f32 %v164, %v437
    %v439 = vadd.f32 %v435, %v438
    %s440 = sld [smem:[#allocation7 + $0x45]]
    %v441 = vstv %s440
    %v442 = vmul.f32 %v171, %v441
    %v443 = vadd.f32 %v439, %v442
    %s444 = sld [smem:[#allocation7 + $0x4e]]
    %v445 = vstv %s444
    %v446 = vmul.f32 %v178, %v445
    %v447 = vadd.f32 %v443, %v446
    %s448 = sld [smem:[#allocation8 + $0x6]]
    %v449 = vstv %s448
    %v450 = vadd.f32 %v447, %v449
    %v451 = vtanh.pop %v450
    %s452 = sld [smem:[#allocation7 + $0x7]]
    %v453 = vstv %s452
    %v454 = vmul.f32 %v122, %v453
    %s455 = sld [smem:[#allocation7 + $0x10]]
    %v456 = vstv %s455
    %v457 = vmul.f32 %v129, %v456
    %v458 = vadd.f32 %v454, %v457
    %s459 = sld [smem:[#allocation7 + $0x19]]
    %v460 = vstv %s459
    %v461 = vmul.f32 %v136, %v460
    %v462 = vadd.f32 %v458, %v461
    %s463 = sld [smem:[#allocation7 + $0x22]]
    %v464 = vstv %s463
    %v465 = vmul.f32 %v143, %v464
    %v466 = vadd.f32 %v462, %v465
    %s467 = sld [smem:[#allocation7 + $0x2b]]
    %v468 = vstv %s467
    %v469 = vmul.f32 %v150, %v468
    %v470 = vadd.f32 %v466, %v469
    %s471 = sld [smem:[#allocation7 + $0x34]]
    %v472 = vstv %s471
    %v473 = vmul.f32 %v157, %v472
    %v474 = vadd.f32 %v470, %v473
    %s475 = sld [smem:[#allocation7 + $0x3d]]
    %v476 = vstv %s475
    %v477 = vmul.f32 %v164, %v476
    %v478 = vadd.f32 %v474, %v477
    %s479 = sld [smem:[#allocation7 + $0x46]]
    %v480 = vstv %s479
    %v481 = vmul.f32 %v171, %v480
    %v482 = vadd.f32 %v478, %v481
    %s483 = sld [smem:[#allocation7 + $0x4f]]
    %v484 = vstv %s483
    %v485 = vmul.f32 %v178, %v484
    %v486 = vadd.f32 %v482, %v485
    %s487 = sld [smem:[#allocation8 + $0x7]]
    %v488 = vstv %s487
    %v489 = vadd.f32 %v486, %v488
    %v490 = vtanh.pop %v489
    %s491 = sld [smem:[#allocation7 + $0x8]]
    %v492 = vstv %s491
    %v493 = vmul.f32 %v122, %v492
    %s494 = sld [smem:[#allocation7 + $0x11]]
    %v495 = vstv %s494
    %v496 = vmul.f32 %v129, %v495
    %v497 = vadd.f32 %v493, %v496
    %s498 = sld [smem:[#allocation7 + $0x1a]]
    %v499 = vstv %s498
    %v500 = vmul.f32 %v136, %v499
    %v501 = vadd.f32 %v497, %v500
    %s502 = sld [smem:[#allocation7 + $0x23]]
    %v503 = vstv %s502
    %v504 = vmul.f32 %v143, %v503
    %v505 = vadd.f32 %v501, %v504
    %s506 = sld [smem:[#allocation7 + $0x2c]]
    %v507 = vstv %s506
    %v508 = vmul.f32 %v150, %v507
    %v509 = vadd.f32 %v505, %v508
    %s510 = sld [smem:[#allocation7 + $0x35]]
    %v511 = vstv %s510
    %v512 = vmul.f32 %v157, %v511
    %v513 = vadd.f32 %v509, %v512
    %s514 = sld [smem:[#allocation7 + $0x3e]]
    %v515 = vstv %s514
    %v516 = vmul.f32 %v164, %v515
    %v517 = vadd.f32 %v513, %v516
    %s518 = sld [smem:[#allocation7 + $0x47]]
    %v519 = vstv %s518
    %v520 = vmul.f32 %v171, %v519
    %v521 = vadd.f32 %v517, %v520
    %s522 = sld [smem:[#allocation7 + $0x50]]
    %v523 = vstv %s522
    %v524 = vmul.f32 %v178, %v523
    %v525 = vadd.f32 %v521, %v524
    %s526 = sld [smem:[#allocation8 + $0x8]]
    %v527 = vstv %s526
    %v528 = vadd.f32 %v525, %v527
    %v529 = vtanh.pop %v528
    %s530 = sld [smem:[#allocation10]]
    %v531 = vstv %s530
    %v532 = vmul.f32 %v217, %v531
    %s533 = sld [smem:[#allocation10 + $0x9]]
    %v534 = vstv %s533
    %v535 = vmul.f32 %v256, %v534
    %v536 = vadd.f32 %v532, %v535
    %s537 = sld [smem:[#allocation10 + $0x12]]
    %v538 = vstv %s537
    %v539 = vmul.f32 %v295, %v538
    %v540 = vadd.f32 %v536, %v539
    %s541 = sld [smem:[#allocation10 + $0x1b]]
    %v542 = vstv %s541
    %v543 = vmul.f32 %v334, %v542
    %v544 = vadd.f32 %v540, %v543
    %s545 = sld [smem:[#allocation10 + $0x24]]
    %v546 = vstv %s545
    %v547 = vmul.f32 %v373, %v546
    %v548 = vadd.f32 %v544, %v547
    %s549 = sld [smem:[#allocation10 + $0x2d]]
    %v550 = vstv %s549
    %v551 = vmul.f32 %v412, %v550
    %v552 = vadd.f32 %v548, %v551
    %s553 = sld [smem:[#allocation10 + $0x36]]
    %v554 = vstv %s553
    %v555 = vmul.f32 %v451, %v554
    %v556 = vadd.f32 %v552, %v555
    %s557 = sld [smem:[#allocation10 + $0x3f]]
    %v558 = vstv %s557
    %v559 = vmul.f32 %v490, %v558
    %v560 = vadd.f32 %v556, %v559
    %s561 = sld [smem:[#allocation10 + $0x48]]
    %v562 = vstv %s561
    %v563 = vmul.f32 %v529, %v562
    %v564 = vadd.f32 %v560, %v563
    %s565 = sld [smem:[#allocation11]]
    %v566 = vstv %s565
    %v567 = vadd.f32 %v564, %v566
    %v568 = vtanh.pop %v567
    %s569 = sld [smem:[#allocation10 + $0x1]]
    %v570 = vstv %s569
    %v571 = vmul.f32 %v217, %v570
    %s572 = sld [smem:[#allocation10 + $0xa]]
    %v573 = vstv %s572
    %v574 = vmul.f32 %v256, %v573
    %v575 = vadd.f32 %v571, %v574
    %s576 = sld [smem:[#allocation10 + $0x13]]
    %v577 = vstv %s576
    %v578 = vmul.f32 %v295, %v577
    %v579 = vadd.f32 %v575, %v578
    %s580 = sld [smem:[#allocation10 + $0x1c]]
    %v581 = vstv %s580
    %v582 = vmul.f32 %v334, %v581
    %v583 = vadd.f32 %v579, %v582
    %s584 = sld [smem:[#allocation10 + $0x25]]
    %v585 = vstv %s584
    %v586 = vmul.f32 %v373, %v585
    %v587 = vadd.f32 %v583, %v586
    %s588 = sld [smem:[#allocation10 + $0x2e]]
    %v589 = vstv %s588
    %v590 = vmul.f32 %v412, %v589
    %v591 = vadd.f32 %v587, %v590
    %s592 = sld [smem:[#allocation10 + $0x37]]
    %v593 = vstv %s592
    %v594 = vmul.f32 %v451, %v593
    %v595 = vadd.f32 %v591, %v594
    %s596 = sld [smem:[#allocation10 + $0x40]]
    %v597 = vstv %s596
    %v598 = vmul.f32 %v490, %v597
    %v599 = vadd.f32 %v595, %v598
    %s600 = sld [smem:[#allocation10 + $0x49]]
    %v601 = vstv %s600
    %v602 = vmul.f32 %v529, %v601
    %v603 = vadd.f32 %v599, %v602
    %s604 = sld [smem:[#allocation11 + $0x1]]
    %v605 = vstv %s604
    %v606 = vadd.f32 %v603, %v605
    %v607 = vtanh.pop %v606
    %s608 = sld [smem:[#allocation10 + $0x2]]
    %v609 = vstv %s608
    %v610 = vmul.f32 %v217, %v609
    %s611 = sld [smem:[#allocation10 + $0xb]]
    %v612 = vstv %s611
    %v613 = vmul.f32 %v256, %v612
    %v614 = vadd.f32 %v610, %v613
    %s615 = sld [smem:[#allocation10 + $0x14]]
    %v616 = vstv %s615
    %v617 = vmul.f32 %v295, %v616
    %v618 = vadd.f32 %v614, %v617
    %s619 = sld [smem:[#allocation10 + $0x1d]]
    %v620 = vstv %s619
    %v621 = vmul.f32 %v334, %v620
    %v622 = vadd.f32 %v618, %v621
    %s623 = sld [smem:[#allocation10 + $0x26]]
    %v624 = vstv %s623
    %v625 = vmul.f32 %v373, %v624
    %v626 = vadd.f32 %v622, %v625
    %s627 = sld [smem:[#allocation10 + $0x2f]]
    %v628 = vstv %s627
    %v629 = vmul.f32 %v412, %v628
    %v630 = vadd.f32 %v626, %v629
    %s631 = sld [smem:[#allocation10 + $0x38]]
    %v632 = vstv %s631
    %v633 = vmul.f32 %v451, %v632
    %v634 = vadd.f32 %v630, %v633
    %s635 = sld [smem:[#allocation10 + $0x41]]
    %v636 = vstv %s635
    %v637 = vmul.f32 %v490, %v636
    %v638 = vadd.f32 %v634, %v637
    %s639 = sld [smem:[#allocation10 + $0x4a]]
    %v640 = vstv %s639
    %v641 = vmul.f32 %v529, %v640
    %v642 = vadd.f32 %v638, %v641
    %s643 = sld [smem:[#allocation11 + $0x2]]
    %v644 = vstv %s643
    %v645 = vadd.f32 %v642, %v644
    %v646 = vtanh.pop %v645
    %s647 = sld [smem:[#allocation10 + $0x3]]
    %v648 = vstv %s647
    %v649 = vmul.f32 %v217, %v648
    %s650 = sld [smem:[#allocation10 + $0xc]]
    %v651 = vstv %s650
    %v652 = vmul.f32 %v256, %v651
    %v653 = vadd.f32 %v649, %v652
    %s654 = sld [smem:[#allocation10 + $0x15]]
    %v655 = vstv %s654
    %v656 = vmul.f32 %v295, %v655
    %v657 = vadd.f32 %v653, %v656
    %s658 = sld [smem:[#allocation10 + $0x1e]]
    %v659 = vstv %s658
    %v660 = vmul.f32 %v334, %v659
    %v661 = vadd.f32 %v657, %v660
    %s662 = sld [smem:[#allocation10 + $0x27]]
    %v663 = vstv %s662
    %v664 = vmul.f32 %v373, %v663
    %v665 = vadd.f32 %v661, %v664
    %s666 = sld [smem:[#allocation10 + $0x30]]
    %v667 = vstv %s666
    %v668 = vmul.f32 %v412, %v667
    %v669 = vadd.f32 %v665, %v668
    %s670 = sld [smem:[#allocation10 + $0x39]]
    %v671 = vstv %s670
    %v672 = vmul.f32 %v451, %v671
    %v673 = vadd.f32 %v669, %v672
    %s674 = sld [smem:[#allocation10 + $0x42]]
    %v675 = vstv %s674
    %v676 = vmul.f32 %v490, %v675
    %v677 = vadd.f32 %v673, %v676
    %s678 = sld [smem:[#allocation10 + $0x4b]]
    %v679 = vstv %s678
    %v680 = vmul.f32 %v529, %v679
    %v681 = vadd.f32 %v677, %v680
    %s682 = sld [smem:[#allocation11 + $0x3]]
    %v683 = vstv %s682
    %v684 = vadd.f32 %v681, %v683
    %v685 = vtanh.pop %v684
    %s686 = sld [smem:[#allocation10 + $0x4]]
    %v687 = vstv %s686
    %v688 = vmul.f32 %v217, %v687
    %s689 = sld [smem:[#allocation10 + $0xd]]
    %v690 = vstv %s689
    %v691 = vmul.f32 %v256, %v690
    %v692 = vadd.f32 %v688, %v691
    %s693 = sld [smem:[#allocation10 + $0x16]]
    %v694 = vstv %s693
    %v695 = vmul.f32 %v295, %v694
    %v696 = vadd.f32 %v692, %v695
    %s697 = sld [smem:[#allocation10 + $0x1f]]
    %v698 = vstv %s697
    %v699 = vmul.f32 %v334, %v698
    %v700 = vadd.f32 %v696, %v699
    %s701 = sld [smem:[#allocation10 + $0x28]]
    %v702 = vstv %s701
    %v703 = vmul.f32 %v373, %v702
    %v704 = vadd.f32 %v700, %v703
    %s705 = sld [smem:[#allocation10 + $0x31]]
    %v706 = vstv %s705
    %v707 = vmul.f32 %v412, %v706
    %v708 = vadd.f32 %v704, %v707
    %s709 = sld [smem:[#allocation10 + $0x3a]]
    %v710 = vstv %s709
    %v711 = vmul.f32 %v451, %v710
    %v712 = vadd.f32 %v708, %v711
    %s713 = sld [smem:[#allocation10 + $0x43]]
    %v714 = vstv %s713
    %v715 = vmul.f32 %v490, %v714
    %v716 = vadd.f32 %v712, %v715
    %s717 = sld [smem:[#allocation10 + $0x4c]]
    %v718 = vstv %s717
    %v719 = vmul.f32 %v529, %v718
    %v720 = vadd.f32 %v716, %v719
    %s721 = sld [smem:[#allocation11 + $0x4]]
    %v722 = vstv %s721
    %v723 = vadd.f32 %v720, %v722
    %v724 = vtanh.pop %v723
    %s725 = sld [smem:[#allocation10 + $0x5]]
    %v726 = vstv %s725
    %v727 = vmul.f32 %v217, %v726
    %s728 = sld [smem:[#allocation10 + $0xe]]
    %v729 = vstv %s728
    %v730 = vmul.f32 %v256, %v729
    %v731 = vadd.f32 %v727, %v730
    %s732 = sld [smem:[#allocation10 + $0x17]]
    %v733 = vstv %s732
    %v734 = vmul.f32 %v295, %v733
    %v735 = vadd.f32 %v731, %v734
    %s736 = sld [smem:[#allocation10 + $0x20]]
    %v737 = vstv %s736
    %v738 = vmul.f32 %v334, %v737
    %v739 = vadd.f32 %v735, %v738
    %s740 = sld [smem:[#allocation10 + $0x29]]
    %v741 = vstv %s740
    %v742 = vmul.f32 %v373, %v741
    %v743 = vadd.f32 %v739, %v742
    %s744 = sld [smem:[#allocation10 + $0x32]]
    %v745 = vstv %s744
    %v746 = vmul.f32 %v412, %v745
    %v747 = vadd.f32 %v743, %v746
    %s748 = sld [smem:[#allocation10 + $0x3b]]
    %v749 = vstv %s748
    %v750 = vmul.f32 %v451, %v749
    %v751 = vadd.f32 %v747, %v750
    %s752 = sld [smem:[#allocation10 + $0x44]]
    %v753 = vstv %s752
    %v754 = vmul.f32 %v490, %v753
    %v755 = vadd.f32 %v751, %v754
    %s756 = sld [smem:[#allocation10 + $0x4d]]
    %v757 = vstv %s756
    %v758 = vmul.f32 %v529, %v757
    %v759 = vadd.f32 %v755, %v758
    %s760 = sld [smem:[#allocation11 + $0x5]]
    %v761 = vstv %s760
    %v762 = vadd.f32 %v759, %v761
    %v763 = vtanh.pop %v762
    %s764 = sld [smem:[#allocation10 + $0x6]]
    %v765 = vstv %s764
    %v766 = vmul.f32 %v217, %v765
    %s767 = sld [smem:[#allocation10 + $0xf]]
    %v768 = vstv %s767
    %v769 = vmul.f32 %v256, %v768
    %v770 = vadd.f32 %v766, %v769
    %s771 = sld [smem:[#allocation10 + $0x18]]
    %v772 = vstv %s771
    %v773 = vmul.f32 %v295, %v772
    %v774 = vadd.f32 %v770, %v773
    %s775 = sld [smem:[#allocation10 + $0x21]]
    %v776 = vstv %s775
    %v777 = vmul.f32 %v334, %v776
    %v778 = vadd.f32 %v774, %v777
    %s779 = sld [smem:[#allocation10 + $0x2a]]
    %v780 = vstv %s779
    %v781 = vmul.f32 %v373, %v780
    %v782 = vadd.f32 %v778, %v781
    %s783 = sld [smem:[#allocation10 + $0x33]]
    %v784 = vstv %s783
    %v785 = vmul.f32 %v412, %v784
    %v786 = vadd.f32 %v782, %v785
    %s787 = sld [smem:[#allocation10 + $0x3c]]
    %v788 = vstv %s787
    %v789 = vmul.f32 %v451, %v788
    %v790 = vadd.f32 %v786, %v789
    %s791 = sld [smem:[#allocation10 + $0x45]]
    %v792 = vstv %s791
    %v793 = vmul.f32 %v490, %v792
    %v794 = vadd.f32 %v790, %v793
    %s795 = sld [smem:[#allocation10 + $0x4e]]
    %v796 = vstv %s795
    %v797 = vmul.f32 %v529, %v796
    %v798 = vadd.f32 %v794, %v797
    %s799 = sld [smem:[#allocation11 + $0x6]]
    %v800 = vstv %s799
    %v801 = vadd.f32 %v798, %v800
    %v802 = vtanh.pop %v801
    %s803 = sld [smem:[#allocation10 + $0x7]]
    %v804 = vstv %s803
    %v805 = vmul.f32 %v217, %v804
    %s806 = sld [smem:[#allocation10 + $0x10]]
    %v807 = vstv %s806
    %v808 = vmul.f32 %v256, %v807
    %v809 = vadd.f32 %v805, %v808
    %s810 = sld [smem:[#allocation10 + $0x19]]
    %v811 = vstv %s810
    %v812 = vmul.f32 %v295, %v811
    %v813 = vadd.f32 %v809, %v812
    %s814 = sld [smem:[#allocation10 + $0x22]]
    %v815 = vstv %s814
    %v816 = vmul.f32 %v334, %v815
    %v817 = vadd.f32 %v813, %v816
    %s818 = sld [smem:[#allocation10 + $0x2b]]
    %v819 = vstv %s818
    %v820 = vmul.f32 %v373, %v819
    %v821 = vadd.f32 %v817, %v820
    %s822 = sld [smem:[#allocation10 + $0x34]]
    %v823 = vstv %s822
    %v824 = vmul.f32 %v412, %v823
    %v825 = vadd.f32 %v821, %v824
    %s826 = sld [smem:[#allocation10 + $0x3d]]
    %v827 = vstv %s826
    %v828 = vmul.f32 %v451, %v827
    %v829 = vadd.f32 %v825, %v828
    %s830 = sld [smem:[#allocation10 + $0x46]]
    %v831 = vstv %s830
    %v832 = vmul.f32 %v490, %v831
    %v833 = vadd.f32 %v829, %v832
    %s834 = sld [smem:[#allocation10 + $0x4f]]
    %v835 = vstv %s834
    %v836 = vmul.f32 %v529, %v835
    %v837 = vadd.f32 %v833, %v836
    %s838 = sld [smem:[#allocation11 + $0x7]]
    %v839 = vstv %s838
    %v840 = vadd.f32 %v837, %v839
    %v841 = vtanh.pop %v840
    %s842 = sld [smem:[#allocation10 + $0x8]]
    %v843 = vstv %s842
    %v844 = vmul.f32 %v217, %v843
    %s845 = sld [smem:[#allocation10 + $0x11]]
    %v846 = vstv %s845
    %v847 = vmul.f32 %v256, %v846
    %v848 = vadd.f32 %v844, %v847
    %s849 = sld [smem:[#allocation10 + $0x1a]]
    %v850 = vstv %s849
    %v851 = vmul.f32 %v295, %v850
    %v852 = vadd.f32 %v848, %v851
    %s853 = sld [smem:[#allocation10 + $0x23]]
    %v854 = vstv %s853
    %v855 = vmul.f32 %v334, %v854
    %v856 = vadd.f32 %v852, %v855
    %s857 = sld [smem:[#allocation10 + $0x2c]]
    %v858 = vstv %s857
    %v859 = vmul.f32 %v373, %v858
    %v860 = vadd.f32 %v856, %v859
    %s861 = sld [smem:[#allocation10 + $0x35]]
    %v862 = vstv %s861
    %v863 = vmul.f32 %v412, %v862
    %v864 = vadd.f32 %v860, %v863
    %s865 = sld [smem:[#allocation10 + $0x3e]]
    %v866 = vstv %s865
    %v867 = vmul.f32 %v451, %v866
    %v868 = vadd.f32 %v864, %v867
    %s869 = sld [smem:[#allocation10 + $0x47]]
    %v870 = vstv %s869
    %v871 = vmul.f32 %v490, %v870
    %v872 = vadd.f32 %v868, %v871
    %s873 = sld [smem:[#allocation10 + $0x50]]
    %v874 = vstv %s873
    %v875 = vmul.f32 %v529, %v874
    %v876 = vadd.f32 %v872, %v875
    %s877 = sld [smem:[#allocation11 + $0x8]]
    %v878 = vstv %s877
    %v879 = vadd.f32 %v876, %v878
    %v880 = vtanh.pop %v879
    %s881 = sld [smem:[#allocation13]]
    %v882 = vstv %s881
    %v883 = vmul.f32 %v568, %v882
    %s884 = sld [smem:[#allocation13 + $0x1]]
    %v885 = vstv %s884
    %v886 = vmul.f32 %v607, %v885
    %v887 = vadd.f32 %v883, %v886
    %s888 = sld [smem:[#allocation13 + $0x2]]
    %v889 = vstv %s888
    %v890 = vmul.f32 %v646, %v889
    %v891 = vadd.f32 %v887, %v890
    %s892 = sld [smem:[#allocation13 + $0x3]]
    %v893 = vstv %s892
    %v894 = vmul.f32 %v685, %v893
    %v895 = vadd.f32 %v891, %v894
    %s896 = sld [smem:[#allocation13 + $0x4]]
    %v897 = vstv %s896
    %v898 = vmul.f32 %v724, %v897
    %v899 = vadd.f32 %v895, %v898
    %s900 = sld [smem:[#allocation13 + $0x5]]
    %v901 = vstv %s900
    %v902 = vmul.f32 %v763, %v901
    %v903 = vadd.f32 %v899, %v902
    %s904 = sld [smem:[#allocation13 + $0x6]]
    %v905 = vstv %s904
    %v906 = vmul.f32 %v802, %v905
    %v907 = vadd.f32 %v903, %v906
    %s908 = sld [smem:[#allocation13 + $0x7]]
    %v909 = vstv %s908
    %v910 = vmul.f32 %v841, %v909
    %v911 = vadd.f32 %v907, %v910
    %s912 = sld [smem:[#allocation13 + $0x8]]
    %v913 = vstv %s912
    %v914 = vmul.f32 %v880, %v913
    %v915 = vadd.f32 %v911, %v914
    %s916 = sld [smem:[#allocation2]]
    %v917 = vstv %s916
    %v918 = vadd.f32 %v915, %v917
    %919 = vst [vmem:[%s9] sm:$0xff] %v918
    // Predicated region
    $region66: #{damped_oscillator_forward.1} parent=1 // pred_check
      _
    $region67: #{damped_oscillator_forward.1} parent=1 // pred_check_branch
      %921 = sbr.rel (0) target = $region69
    $region68: #{damped_oscillator_forward.1} parent=1 // pred_region
      _
    $region69: #{damped_oscillator_forward.1} parent=1 // pred_fallthru
      _
    // Predicated region
    $region70: #{damped_oscillator_forward.1} parent=1 // pred_check
      _
    $region71: #{damped_oscillator_forward.1} parent=1 // pred_check_branch
      %923 = sbr.rel (0) target = $region73
    $region72: #{damped_oscillator_forward.1} parent=1 // pred_region
      _
    $region73: #{damped_oscillator_forward.1} parent=1 // pred_fallthru
      _
    %924 = vsyncpa [#allocation4], 1
    %925 = vsyncpa [#allocation6], 1
    %926 = vsyncpa [#allocation9], 1
    %927 = vsyncpa [#allocation12], 1

</llo_original>
